<compile_context>
chip_gen: v7x
topology: tpu7x:2x2x1
jax: 0.10.0
libtpu: 0.0.40
codegen_flags: <defaults>
</compile_context>

<pallas_src>
import jax
import jax.numpy as jnp
from jax.experimental import pallas as pl
from jax.experimental.pallas import tpu as pltpu


def _round_up(x, m):
    return (x + m - 1) // m * m


def global_attention_kernel(q_ref, ctx_ref, w1t_ref, w2tc_ref, w2tq_ref, o_ref):
    # q_ref    : (TB, Hp)
    # ctx_ref  : (TB, S, Hp)
    # w1t_ref  : (Hp, Hp)   = W1.T (zero-padded)
    # w2tc_ref : (Hp, Hp)   = W2.T[:H]  (multiplies c)
    # w2tq_ref : (Hp, Hp)   = W2.T[H:]  (multiplies query)
    q = q_ref[...]
    ctx = ctx_ref[...]

    # q1 = L1(query)                                       (TB, Hp)   -- MXU
    q1 = jnp.dot(q, w1t_ref[...], preferred_element_type=jnp.float32)

    # scores[b, s] = <ctx[b, s, :], q1[b, :]>               (TB, 1, S) -- batched MXU matmul
    s = jnp.einsum("bqh,bsh->bqs", q1.astype(ctx.dtype)[:, None, :], ctx,
                   preferred_element_type=jnp.float32)

    # softmax over the sequence axis (last axis of s)
    m = jnp.max(s, axis=-1, keepdims=True)                  # (TB, 1, 1)
    e = jnp.exp(s - m)                                       # EUP
    denom = jnp.sum(e, axis=-1, keepdims=True)               # (TB, 1, 1)
    p = e * pl.reciprocal(denom, approx=False)               # EUP reciprocal + VPU mul

    # c[b, :] = sum_s p[b, s] * ctx[b, s, :]                (TB, 1, Hp) -- batched MXU matmul
    c = jnp.einsum("bqs,bsh->bqh", p.astype(ctx.dtype), ctx,
                   preferred_element_type=jnp.float32)[:, 0, :]          # (TB, Hp)

    # tanh(concat([c, q]) @ W2^T) == tanh(c @ W2.T[:H] + q @ W2.T[H:])
    out = jnp.tanh(
        jnp.dot(c.astype(ctx.dtype), w2tc_ref[...], preferred_element_type=jnp.float32)
        + jnp.dot(q, w2tq_ref[...], preferred_element_type=jnp.float32)
    )
    o_ref[...] = out.astype(o_ref.dtype)


def global_attention(query, context, w1, w2, *, vmem_tile_budget_bytes=24 * 1024 * 1024):
    """query: (B, H); context: (B, S, H); w1: (H, H), w2: (H, 2H) in PyTorch (out, in) layout."""
    B, H = query.shape
    _, S, _ = context.shape
    dtype = query.dtype
    itemsize = jnp.dtype(dtype).itemsize

    # Lane-dense hidden dim (multiple of 128).
    Hp = _round_up(H, 128)

    # Largest batch tile (multiple of 8) whose double-buffered working set fits
    # the budget (kept comfortable under v7x's 64 MiB VMEM per TensorCore).
    def tile_bytes(tb):
        ctx_t = tb * S * Hp * itemsize
        io_t = 2 * tb * Hp * itemsize            # query-in + out
        w_t = 3 * Hp * Hp * itemsize
        return 2 * (ctx_t + io_t) + 2 * w_t      # x2 for double buffering

    TB = 8
    for cand in (512, 256, 128, 64, 32, 16, 8):
        if tile_bytes(cand) <= vmem_tile_budget_bytes:
            TB = cand
            break
    TB = min(TB, _round_up(B, 8))
    Bp = _round_up(B, TB)
    num_tiles = Bp // TB

    # Zero-pad to (Bp, Hp). Padded rows/cols are mathematically inert (zero
    # context/weight columns, tanh(0)=0 for padded outputs) and are sliced off.
    qp = jnp.pad(query, ((0, Bp - B), (0, Hp - H)))
    ctxp = jnp.pad(context, ((0, Bp - B), (0, 0), (0, Hp - H)))
    w1t = jnp.pad(w1.T.astype(dtype), ((0, Hp - H), (0, Hp - H)))
    w2t = w2.T.astype(dtype)                                  # (2H, H)
    w2tc = jnp.pad(w2t[:H], ((0, Hp - H), (0, Hp - H)))       # multiplies c
    w2tq = jnp.pad(w2t[H:], ((0, Hp - H), (0, Hp - H)))       # multiplies query

    flops = (2 * Bp * Hp * Hp              # q1 = q @ W1^T
             + 2 * Bp * S * Hp             # scores
             + 2 * Bp * S * Hp             # weighted sum
             + 2 * Bp * (2 * Hp) * Hp)     # output projection
    transcendentals = Bp * S + Bp * Hp + Bp
    bytes_accessed = itemsize * (Bp * S * Hp + 2 * Bp * Hp + 3 * Hp * Hp)

    vmem_limit = int(min(48 * 1024 * 1024,
                         max(32 * 1024 * 1024, 2 * tile_bytes(TB))))

    out = pl.pallas_call(
        global_attention_kernel,
        out_shape=jax.ShapeDtypeStruct((Bp, Hp), dtype),
        grid=(num_tiles,),
        in_specs=[
            pl.BlockSpec((TB, Hp), lambda i: (i, 0)),
            pl.BlockSpec((TB, S, Hp), lambda i: (i, 0, 0)),
            pl.BlockSpec((Hp, Hp), lambda i: (0, 0)),    # weights stay VMEM-resident
            pl.BlockSpec((Hp, Hp), lambda i: (0, 0)),
            pl.BlockSpec((Hp, Hp), lambda i: (0, 0)),
        ],
        out_specs=pl.BlockSpec((TB, Hp), lambda i: (i, 0)),
        compiler_params=pltpu.CompilerParams(
            dimension_semantics=("parallel",),
            vmem_limit_bytes=vmem_limit,
        ),
        cost_estimate=pl.CostEstimate(
            flops=int(flops),
            transcendentals=int(transcendentals),
            bytes_accessed=int(bytes_accessed),
        ),
    )(qp, ctxp, w1t, w2tc, w2tq)

    return out[:B, :H]


def reference_global_attention(query, context, w1, w2):
    """Pure-JAX reference matching the PyTorch module exactly."""
    q1 = query @ w1.T                                          # (B, H)
    a = jnp.einsum("bsh,bh->bs", context, q1)                  # (B, S)
    a = jax.nn.softmax(a, axis=1)                              # (B, S)
    c = jnp.einsum("bs,bsh->bh", a, context)                   # (B, H)
    cat = jnp.concatenate([c, query], axis=1)                  # (B, 2H)
    return jnp.tanh(cat @ w2.T)                                # (B, H)


if __name__ == "__main__":
    B, S, H = 2, 8, 32
    key = jax.random.PRNGKey(0)
    k_q, k_ctx, k_w1, k_w2 = jax.random.split(key, 4)

    query = jax.random.normal(k_q, (B, H), dtype=jnp.float32)
    context = jax.random.normal(k_ctx, (B, S, H), dtype=jnp.float32)

    # PyTorch nn.Linear-style uniform(-1/sqrt(fan_in), 1/sqrt(fan_in)) init.
    bound1 = 1.0 / jnp.sqrt(jnp.float32(H))
    bound2 = 1.0 / jnp.sqrt(jnp.float32(2 * H))
    w1 = jax.random.uniform(k_w1, (H, H), minval=-bound1, maxval=bound1, dtype=jnp.float32)
    w2 = jax.random.uniform(k_w2, (H, 2 * H), minval=-bound2, maxval=bound2, dtype=jnp.float32)

    out = global_attention(query, context, w1, w2)
    out = jax.block_until_ready(out)

    ref = reference_global_attention(query, context, w1, w2)
    assert out.shape == (B, H)
    assert jnp.allclose(out, ref, atol=3e-5, rtol=3e-5), "mismatch vs reference"

    print("KERNEL_OK")
</pallas_src>

<mosaic_0001>
module attributes {stable_mosaic.version = 11 : i64} {
  func.func @global_attention_kernel(%arg0: i32, %arg1: memref<8x128xf32, #tpu.memory_space<vmem>>, %arg2: memref<8x8x128xf32, #tpu.memory_space<vmem>>, %arg3: memref<128x128xf32, #tpu.memory_space<vmem>>, %arg4: memref<128x128xf32, #tpu.memory_space<vmem>>, %arg5: memref<128x128xf32, #tpu.memory_space<vmem>>, %arg6: memref<8x128xf32, #tpu.memory_space<vmem>>) attributes {dimension_semantics = [#tpu.dimension_semantics<parallel>], iteration_bounds = array<i64: 1>, scalar_prefetch = 0 : i64, scratch_operands = 0 : i64, tpu.core_type = #tpu.core_type<tc>, window_params = [{transform_indices = @transform_0, window_bounds = array<i64: 8, 128>}, {transform_indices = @transform_1, window_bounds = array<i64: 8, 8, 128>}, {pipeline_mode = #tpu.pipeline_mode<synchronous>, transform_indices = @transform_2, window_bounds = array<i64: 128, 128>}, {pipeline_mode = #tpu.pipeline_mode<synchronous>, transform_indices = @transform_3, window_bounds = array<i64: 128, 128>}, {pipeline_mode = #tpu.pipeline_mode<synchronous>, transform_indices = @transform_4, window_bounds = array<i64: 128, 128>}, {transform_indices = @transform_5, window_bounds = array<i64: 8, 128>}]} {
    %c0 = arith.constant 0 : index
    %c0_0 = arith.constant 0 : index
    %0 = vector.load %arg1[%c0, %c0_0] : memref<8x128xf32, #tpu.memory_space<vmem>>, vector<8x128xf32>
    %c0_1 = arith.constant 0 : index
    %c0_2 = arith.constant 0 : index
    %c0_3 = arith.constant 0 : index
    %1 = vector.load %arg2[%c0_1, %c0_2, %c0_3] : memref<8x8x128xf32, #tpu.memory_space<vmem>>, vector<8x8x128xf32>
    %c0_4 = arith.constant 0 : index
    %c0_5 = arith.constant 0 : index
    %2 = vector.load %arg3[%c0_4, %c0_5] : memref<128x128xf32, #tpu.memory_space<vmem>>, vector<128x128xf32>
    %cst = arith.constant dense<0.000000e+00> : vector<8x128xf32>
    %3 = tpu.matmul %0, %2, %cst {dimension_numbers = #tpu.dot_dimension_numbers<[1], [0], [0], [1], [0, 0, 1, 1], [], []>} : vector<8x128xf32>, vector<128x128xf32>, vector<8x128xf32> -> vector<8x128xf32>
    %4 = vector.shape_cast %3 : vector<8x128xf32> to vector<8x1x128xf32>
    "tpu.trace_start"() <{level = 10 : i32, message = "bqh,bsh->bqs"}> : () -> ()
    %cst_6 = arith.constant dense<0.000000e+00> : vector<8x1x8xf32>
    %5 = tpu.matmul %4, %1, %cst_6 {dimension_numbers = #tpu.dot_dimension_numbers<[2], [2], [1], [1], [0, 0, 0, 1, 1, 1], [0], [0]>} : vector<8x1x128xf32>, vector<8x8x128xf32>, vector<8x1x8xf32> -> vector<8x1x8xf32>
    "tpu.trace_stop"() : () -> ()
    %cst_7 = arith.constant dense<0xFF800000> : vector<8x1xf32>
    %6 = vector.multi_reduction <maximumf>, %5, %cst_7 [2] : vector<8x1x8xf32> to vector<8x1xf32>
    %7 = vector.shape_cast %6 : vector<8x1xf32> to vector<8x1x1xf32>
    %8 = vector.broadcast %7 : vector<8x1x1xf32> to vector<8x1x8xf32>
    %9 = arith.subf %5, %8 : vector<8x1x8xf32>
    %10 = math.exp %9 : vector<8x1x8xf32>
    %cst_8 = arith.constant dense<0.000000e+00> : vector<8x1xf32>
    %11 = vector.multi_reduction <add>, %10, %cst_8 [2] : vector<8x1x8xf32> to vector<8x1xf32>
    %12 = vector.shape_cast %11 : vector<8x1xf32> to vector<8x1x1xf32>
    %13 = tpu.reciprocal %12 : vector<8x1x1xf32> -> vector<8x1x1xf32>
    %14 = vector.broadcast %13 : vector<8x1x1xf32> to vector<8x1x8xf32>
    %15 = arith.mulf %10, %14 : vector<8x1x8xf32>
    "tpu.trace_start"() <{level = 10 : i32, message = "bqs,bsh->bqh"}> : () -> ()
    %cst_9 = arith.constant dense<0.000000e+00> : vector<8x1x128xf32>
    %16 = tpu.matmul %15, %1, %cst_9 {dimension_numbers = #tpu.dot_dimension_numbers<[2], [1], [1], [2], [0, 0, 0, 1, 1, 2], [0], [0]>} : vector<8x1x8xf32>, vector<8x8x128xf32>, vector<8x1x128xf32> -> vector<8x1x128xf32>
    "tpu.trace_stop"() : () -> ()
    %17 = vector.shape_cast %16 : vector<8x1x128xf32> to vector<8x128xf32>
    %c0_10 = arith.constant 0 : index
    %c0_11 = arith.constant 0 : index
    %18 = vector.load %arg4[%c0_10, %c0_11] : memref<128x128xf32, #tpu.memory_space<vmem>>, vector<128x128xf32>
    %cst_12 = arith.constant dense<0.000000e+00> : vector<8x128xf32>
    %19 = tpu.matmul %17, %18, %cst_12 {dimension_numbers = #tpu.dot_dimension_numbers<[1], [0], [0], [1], [0, 0, 1, 1], [], []>} : vector<8x128xf32>, vector<128x128xf32>, vector<8x128xf32> -> vector<8x128xf32>
    %c0_13 = arith.constant 0 : index
    %c0_14 = arith.constant 0 : index
    %20 = vector.load %arg5[%c0_13, %c0_14] : memref<128x128xf32, #tpu.memory_space<vmem>>, vector<128x128xf32>
    %cst_15 = arith.constant dense<0.000000e+00> : vector<8x128xf32>
    %21 = tpu.matmul %0, %20, %cst_15 {dimension_numbers = #tpu.dot_dimension_numbers<[1], [0], [0], [1], [0, 0, 1, 1], [], []>} : vector<8x128xf32>, vector<128x128xf32>, vector<8x128xf32> -> vector<8x128xf32>
    %22 = arith.addf %19, %21 : vector<8x128xf32>
    %23 = math.tanh %22 : vector<8x128xf32>
    %c0_16 = arith.constant 0 : index
    %c0_17 = arith.constant 0 : index
    %24 = vector.load %arg6[%c0_16, %c0_17] : memref<8x128xf32, #tpu.memory_space<vmem>>, vector<8x128xf32>
    tpu.vector_store %arg6[%c0_16, %c0_17], %23 {strides = array<i32>} : memref<8x128xf32, #tpu.memory_space<vmem>>, vector<8x128xf32>,
    return
  }
  func.func @transform_0(%arg0: i32) -> (i32, i32) {
    %c0_i32 = arith.constant 0 : i32
    %c0_i32_0 = arith.constant 0 : i32
    return %arg0, %c0_i32 : i32, i32
  }
  func.func @transform_1(%arg0: i32) -> (i32, i32, i32) {
    %c0_i32 = arith.constant 0 : i32
    %c0_i32_0 = arith.constant 0 : i32
    %c0_i32_1 = arith.constant 0 : i32
    return %arg0, %c0_i32, %c0_i32_0 : i32, i32, i32
  }
  func.func @transform_2(%arg0: i32) -> (i32, i32) {
    %c0_i32 = arith.constant 0 : i32
    %c0_i32_0 = arith.constant 0 : i32
    %c0_i32_1 = arith.constant 0 : i32
    return %c0_i32, %c0_i32_0 : i32, i32
  }
  func.func @transform_3(%arg0: i32) -> (i32, i32) {
    %c0_i32 = arith.constant 0 : i32
    %c0_i32_0 = arith.constant 0 : i32
    %c0_i32_1 = arith.constant 0 : i32
    return %c0_i32, %c0_i32_0 : i32, i32
  }
  func.func @transform_4(%arg0: i32) -> (i32, i32) {
    %c0_i32 = arith.constant 0 : i32
    %c0_i32_0 = arith.constant 0 : i32
    %c0_i32_1 = arith.constant 0 : i32
    return %c0_i32, %c0_i32_0 : i32, i32
  }
  func.func @transform_5(%arg0: i32) -> (i32, i32) {
    %c0_i32 = arith.constant 0 : i32
    %c0_i32_0 = arith.constant 0 : i32
    return %arg0, %c0_i32 : i32, i32
  }
}

</mosaic_0001>

<llo_original>
// kernel: tpu_custom_call.1
$region0: #{tpu_custom_call.1}
  #allocation0 [shape = 'u32[]', space=smem, size = 0x4, offset = 0x4, fixed_abs, tag = 'smem constant byte address 0x4 - core index']
  #allocation1 [shape = 'u32[144,128]{1,0:T(1,128)}', space=vmem, size = 0x12000, scoped, tag = 'internal scratch']
  %s0 = inlined_call_operand.hbm [shape: f32[8,128], index: 0, kind: input, shape index: {}]
  %s1 = inlined_call_operand.hbm [shape: f32[8,8,128], index: 1, kind: input, shape index: {}]
  %s2 = inlined_call_operand.hbm [shape: f32[128,128], index: 2, kind: input, shape index: {}]
  %s3 = inlined_call_operand.hbm [shape: f32[128,128], index: 3, kind: input, shape index: {}]
  %s4 = inlined_call_operand.hbm [shape: f32[128,128], index: 4, kind: input, shape index: {}]
  %s5 = inlined_call_operand.hbm [shape: f32[8,128], index: 5, kind: output, shape index: {}]
  %s6 = sld [smem:[#allocation0]]
  $region50: #{tpu_custom_call.1} parent=0
    _
  %s8 = ssub.s32 1, %s6
  %s9 = scalar_select 0, %s8, %s6
  $region1: #{tpu_custom_call.1} parent=0
    #allocation2 [shape = 'u8[4096]{0}', space=vmem, size = 0x1000, scoped, tag = 'input window, operand 0, single buffered']
    #allocation3 [shape = 's32[1]{0}', space=sflag, size = 0x4, scoped, tag = 'scoped memory for tpu_custom_call.1']
    #allocation4 [shape = 's32[1]{0}', space=sflag, size = 0x4, scoped, tag = 'scoped memory for tpu_custom_call.1']
    #allocation5 [shape = 'u8[32768]{0}', space=vmem, size = 0x8000, scoped, tag = 'input window, operand 1, single buffered']
    #allocation6 [shape = 's32[1]{0}', space=sflag, size = 0x4, scoped, tag = 'scoped memory for tpu_custom_call.1']
    #allocation7 [shape = 'u8[65536]{0}', space=vmem, size = 0x10000, scoped, tag = 'input window, operand 2, single buffered']
    #allocation8 [shape = 'u8[65536]{0}', space=vmem, size = 0x10000, scoped, tag = 'input window, operand 3, single buffered']
    #allocation9 [shape = 's32[1]{0}', space=sflag, size = 0x4, scoped, tag = 'scoped memory for tpu_custom_call.1']
    #allocation10 [shape = 'u8[65536]{0}', space=vmem, size = 0x10000, scoped, tag = 'input window, operand 4, single buffered']
    #allocation11 [shape = 'u8[4096]{0}', space=vmem, size = 0x1000, scoped, tag = 'output window, operand 0, single buffered']
    %10 = vsyncpa [#allocation3], 0
    %11 = vsyncpa [#allocation6], 0
    %12 = vsyncpa [#allocation9], 0
    %13 = vsyncpa [#allocation4], 0
    // Predicated region
    $region2: #{tpu_custom_call.1} parent=1 // pred_check
      _
    $region3: #{tpu_custom_call.1} parent=1 // pred_check_branch
      %15 = sbr.rel (0) target = $region5
    $region4: #{tpu_custom_call.1} parent=1 // pred_region
      %s17 = ssub.s32 128, 128
      %18 = vsyncadd [#allocation3], %s17
      %s20 = sshll.u32 [#allocation2], 4
      %s21 = int_to_ptr.vmem [resolvable:$true] %s20
      %23 = dma.hbm_to_vmem [thread:$0]  %s0, 128, %s21, [#allocation3]
    $region5: #{tpu_custom_call.1} parent=1 // pred_fallthru
      _
    // Predicated region
    $region6: #{tpu_custom_call.1} parent=1 // pred_check
      _
    $region7: #{tpu_custom_call.1} parent=1 // pred_check_branch
      %25 = sbr.rel (0) target = $region9
    $region8: #{tpu_custom_call.1} parent=1 // pred_region
      %s27 = ssub.s32 1024, 1024
      %28 = vsyncadd [#allocation6], %s27
      %s29 = sshll.u32 [#allocation5], 4
      %s30 = int_to_ptr.vmem [resolvable:$true] %s29
      %35 = dma.hbm_to_vmem [thread:$0]  %s1, 1024, %s30, [#allocation6], 128, 128, 8
    $region9: #{tpu_custom_call.1} parent=1 // pred_fallthru
      _
    // Predicated region
    $region10: #{tpu_custom_call.1} parent=1 // pred_check
      _
    $region11: #{tpu_custom_call.1} parent=1 // pred_check_branch
      %37 = sbr.rel (0) target = $region13
    $region12: #{tpu_custom_call.1} parent=1 // pred_region
      %s39 = ssub.s32 2048, 2048
      %40 = vsyncadd [#allocation6], %s39
      %s41 = sshll.u32 [#allocation7], 4
      %s42 = int_to_ptr.vmem [resolvable:$true] %s41
      %47 = dma.hbm_to_vmem [thread:$0]  %s2, 2048, %s42, [#allocation6], 128, 128, 8
    $region13: #{tpu_custom_call.1} parent=1 // pred_fallthru
      _
    // Predicated region
    $region14: #{tpu_custom_call.1} parent=1 // pred_check
      _
    $region15: #{tpu_custom_call.1} parent=1 // pred_check_branch
      %49 = sbr.rel (0) target = $region17
    $region16: #{tpu_custom_call.1} parent=1 // pred_region
      %s51 = ssub.s32 2048, 2048
      %52 = vsyncadd [#allocation9], %s51
      %s53 = sshll.u32 [#allocation8], 4
      %s54 = int_to_ptr.vmem [resolvable:$true] %s53
      %59 = dma.hbm_to_vmem [thread:$0]  %s3, 2048, %s54, [#allocation9], 128, 128, 8
    $region17: #{tpu_custom_call.1} parent=1 // pred_fallthru
      _
    // Predicated region
    $region18: #{tpu_custom_call.1} parent=1 // pred_check
      _
    $region19: #{tpu_custom_call.1} parent=1 // pred_check_branch
      %61 = sbr.rel (0) target = $region21
    $region20: #{tpu_custom_call.1} parent=1 // pred_region
      %s63 = ssub.s32 2048, 2048
      %64 = vsyncadd [#allocation9], %s63
      %s65 = sshll.u32 [#allocation10], 4
      %s66 = int_to_ptr.vmem [resolvable:$true] %s65
      %71 = dma.hbm_to_vmem [thread:$0]  %s4, 2048, %s66, [#allocation9], 128, 128, 8
    $region21: #{tpu_custom_call.1} parent=1 // pred_fallthru
      _
    // Predicated region
    $region22: #{tpu_custom_call.1} parent=1 // pred_check
      _
    $region23: #{tpu_custom_call.1} parent=1 // pred_check_branch
      %73 = sbr.rel (0) target = $region25
    $region24: #{tpu_custom_call.1} parent=1 // pred_region
      %74 = dma.done [#allocation3], 128
    $region25: #{tpu_custom_call.1} parent=1 // pred_fallthru
      _
    // Predicated region
    $region26: #{tpu_custom_call.1} parent=1 // pred_check
      _
    $region27: #{tpu_custom_call.1} parent=1 // pred_check_branch
      %76 = sbr.rel (0) target = $region29
    $region28: #{tpu_custom_call.1} parent=1 // pred_region
      %77 = dma.done [#allocation6], 1024
    $region29: #{tpu_custom_call.1} parent=1 // pred_fallthru
      _
    // Predicated region
    $region30: #{tpu_custom_call.1} parent=1 // pred_check
      _
    $region31: #{tpu_custom_call.1} parent=1 // pred_check_branch
      %79 = sbr.rel (0) target = $region33
    $region32: #{tpu_custom_call.1} parent=1 // pred_region
      %80 = dma.done [#allocation6], 2048
    $region33: #{tpu_custom_call.1} parent=1 // pred_fallthru
      _
    // Predicated region
    $region34: #{tpu_custom_call.1} parent=1 // pred_check
      _
    $region35: #{tpu_custom_call.1} parent=1 // pred_check_branch
      %82 = sbr.rel (0) target = $region37
    $region36: #{tpu_custom_call.1} parent=1 // pred_region
      %83 = dma.done [#allocation9], 2048
    $region37: #{tpu_custom_call.1} parent=1 // pred_fallthru
      _
    // Predicated region
    $region38: #{tpu_custom_call.1} parent=1 // pred_check
      _
    $region39: #{tpu_custom_call.1} parent=1 // pred_check_branch
      %85 = sbr.rel (0) target = $region41
    $region40: #{tpu_custom_call.1} parent=1 // pred_region
      %86 = dma.done [#allocation9], 2048
    $region41: #{tpu_custom_call.1} parent=1 // pred_fallthru
      _
    %v87 = vld [vmem:[#allocation2] sm:$0xff]
    %v88 = vld [vmem:[#allocation5] sm:$0xff]
    %v89 = vld [vmem:[#allocation5 + $0x8] sm:$0xff]
    %v90 = vld [vmem:[#allocation5 + $0x10] sm:$0xff]
    %v91 = vld [vmem:[#allocation5 + $0x18] sm:$0xff]
    %v92 = vld [vmem:[#allocation5 + $0x20] sm:$0xff]
    %v93 = vld [vmem:[#allocation5 + $0x28] sm:$0xff]
    %v94 = vld [vmem:[#allocation5 + $0x30] sm:$0xff]
    %v95 = vld [vmem:[#allocation5 + $0x38] sm:$0xff]
    %v96 = vld [vmem:[#allocation7] sm:$0xff]
    %v97 = vld [vmem:[#allocation7 + $0x8] sm:$0xff]
    %v98 = vld [vmem:[#allocation7 + $0x10] sm:$0xff]
    %v99 = vld [vmem:[#allocation7 + $0x18] sm:$0xff]
    %v100 = vld [vmem:[#allocation7 + $0x20] sm:$0xff]
    %v101 = vld [vmem:[#allocation7 + $0x28] sm:$0xff]
    %v102 = vld [vmem:[#allocation7 + $0x30] sm:$0xff]
    %v103 = vld [vmem:[#allocation7 + $0x38] sm:$0xff]
    %v104 = vld [vmem:[#allocation7 + $0x40] sm:$0xff]
    %v105 = vld [vmem:[#allocation7 + $0x48] sm:$0xff]
    %v106 = vld [vmem:[#allocation7 + $0x50] sm:$0xff]
    %v107 = vld [vmem:[#allocation7 + $0x58] sm:$0xff]
    %v108 = vld [vmem:[#allocation7 + $0x60] sm:$0xff]
    %v109 = vld [vmem:[#allocation7 + $0x68] sm:$0xff]
    %v110 = vld [vmem:[#allocation7 + $0x70] sm:$0xff]
    %v111 = vld [vmem:[#allocation7 + $0x78] sm:$0xff]
    %112 = vmatprep.subr.mxu0 0.0
    %113 = vmatpush1.msra.mxu0 %v96
    %114 = vmatprep.subr.mxu0 0.0
    %115 = vmatpush1.msra.mxu0 %v97
    %116 = vmatprep.subr.mxu0 0.0
    %117 = vmatpush1.msra.mxu0 %v98
    %118 = vmatprep.subr.mxu0 0.0
    %119 = vmatpush1.msra.mxu0 %v99
    %120 = vmatprep.subr.mxu0 0.0
    %121 = vmatpush1.msra.mxu0 %v100
    %122 = vmatprep.subr.mxu0 0.0
    %123 = vmatpush1.msra.mxu0 %v101
    %124 = vmatprep.subr.mxu0 0.0
    %125 = vmatpush1.msra.mxu0 %v102
    %126 = vmatprep.subr.mxu0 0.0
    %127 = vmatpush1.msra.mxu0 %v103
    %128 = vmatprep.subr.mxu0 0.0
    %129 = vmatpush1.msra.mxu0 %v104
    %130 = vmatprep.subr.mxu0 0.0
    %131 = vmatpush1.msra.mxu0 %v105
    %132 = vmatprep.subr.mxu0 0.0
    %133 = vmatpush1.msra.mxu0 %v106
    %134 = vmatprep.subr.mxu0 0.0
    %135 = vmatpush1.msra.mxu0 %v107
    %136 = vmatprep.subr.mxu0 0.0
    %137 = vmatpush1.msra.mxu0 %v108
    %138 = vmatprep.subr.mxu0 0.0
    %139 = vmatpush1.msra.mxu0 %v109
    %140 = vmatprep.subr.mxu0 0.0
    %141 = vmatpush1.msra.mxu0 %v110
    %142 = vmatprep.subr.mxu0 0.0
    %143 = vmatpush1.msra.mxu0 %v111
    %144 = vmatprep.subr.mxu0 0.0
    %145 = vmatpush1.msra.mxu0 0.0
    %146 = vmatprep.subr.mxu0 0.0
    %147 = vmatpush1.msra.mxu0 0.0
    %148 = vmatprep.subr.mxu0 0.0
    %149 = vmatpush1.msra.mxu0 0.0
    %150 = vmatprep.subr.mxu0 0.0
    %151 = vmatpush1.msra.mxu0 0.0
    %152 = vmatprep.subr.mxu0 0.0
    %153 = vmatpush1.msra.mxu0 0.0
    %154 = vmatprep.subr.mxu0 0.0
    %155 = vmatpush1.msra.mxu0 0.0
    %156 = vmatprep.subr.mxu0 0.0
    %157 = vmatpush1.msra.mxu0 0.0
    %158 = vmatprep.subr.mxu0 0.0
    %159 = vmatpush1.msra.mxu0 0.0
    %160 = vmatprep.subr.mxu0 0.0
    %161 = vmatpush1.msra.mxu0 0.0
    %162 = vmatprep.subr.mxu0 0.0
    %163 = vmatpush1.msra.mxu0 0.0
    %164 = vmatprep.subr.mxu0 0.0
    %165 = vmatpush1.msra.mxu0 0.0
    %166 = vmatprep.subr.mxu0 0.0
    %167 = vmatpush1.msra.mxu0 0.0
    %168 = vmatprep.subr.mxu0 0.0
    %169 = vmatpush1.msra.mxu0 0.0
    %170 = vmatprep.subr.mxu0 0.0
    %171 = vmatpush1.msra.mxu0 0.0
    %172 = vmatprep.subr.mxu0 0.0
    %173 = vmatpush1.msra.mxu0 0.0
    %174 = vmatprep.subr.mxu0 0.0
    %175 = vmatpush1.msra.mxu0 0.0
    %176 = vmatprep.mubr.f32.mxu0 0.0
    %177 = vmatmul.mubr.f32.gmra.mrb[0].mxu0 %v87
    %v178 = vpop.f32.mrb[0].mxu0
    %v179 = vadd.f32 0.0, %v178
    %v180 = vpop.f32.mrb[0].mxu0
    %181 = vdwg.mxu0
    %v183 = vcombine.high %v179, %v179
    %v185 = vunpack.c.l.s4 1966171168
    %v186 = vunpack.c.0.s8 %v185
    %v187 = vlaneseq
    %v188 = vshrl.u32 %v187, 7
    %v189 = vsub.s32 %v186, %v188
    %v190 = vrot.slane %v179, %v189
    %v192 = vunpack.c.l.s4 1966171168
    %v193 = vunpack.c.0.s8 %v192
    %v194 = vlaneseq
    %v195 = vshrl.u32 %v194, 7
    %v196 = vsub.s32 %v193, %v195
    %v197 = vrot.slane %v183, %v196
    %v198 = vcombine.high %v190, %v190
    %v199 = vcombine.high %v197, %v197
    %v201 = vunpack.c.l.s4 1966171168
    %v202 = vunpack.c.0.s8 %v201
    %v203 = vlaneseq
    %v204 = vshrl.u32 %v203, 7
    %v205 = vsub.s32 %v202, %v204
    %v206 = vrot.slane %v190, %v205
    %v208 = vunpack.c.l.s4 1966171168
    %v209 = vunpack.c.0.s8 %v208
    %v210 = vlaneseq
    %v211 = vshrl.u32 %v210, 7
    %v212 = vsub.s32 %v209, %v211
    %v213 = vrot.slane %v197, %v212
    %v215 = vunpack.c.l.s4 1966171168
    %v216 = vunpack.c.0.s8 %v215
    %v217 = vlaneseq
    %v218 = vshrl.u32 %v217, 7
    %v219 = vsub.s32 %v216, %v218
    %v220 = vrot.slane %v198, %v219
    %v222 = vunpack.c.l.s4 1966171168
    %v223 = vunpack.c.0.s8 %v222
    %v224 = vlaneseq
    %v225 = vshrl.u32 %v224, 7
    %v226 = vsub.s32 %v223, %v225
    %v227 = vrot.slane %v199, %v226
    %v228 = vcombine.high %v206, %v206
    %v229 = vcombine.high %v213, %v213
    %v230 = vcombine.high %v220, %v220
    %v231 = vcombine.high %v227, %v227
    %240 = vmatprep.subr.mxu0 0.0
    %241 = vmatpush1.xpose.msra.mxu0 %v88
    %242 = vmatprep.subr.mxu0 0.0
    %243 = vmatpush1.xpose.msra.mxu0 0.0
    %244 = vmatprep.subr.mxu0 0.0
    %245 = vmatpush1.xpose.msra.mxu0 0.0
    %246 = vmatprep.subr.mxu0 0.0
    %247 = vmatpush1.xpose.msra.mxu0 0.0
    %248 = vmatprep.subr.mxu0 0.0
    %249 = vmatpush1.xpose.msra.mxu0 0.0
    %250 = vmatprep.subr.mxu0 0.0
    %251 = vmatpush1.xpose.msra.mxu0 0.0
    %252 = vmatprep.subr.mxu0 0.0
    %253 = vmatpush1.xpose.msra.mxu0 0.0
    %254 = vmatprep.subr.mxu0 0.0
    %255 = vmatpush1.xpose.msra.mxu0 0.0
    %256 = vmatprep.subr.mxu0 0.0
    %257 = vmatpush1.xpose.msra.mxu0 0.0
    %258 = vmatprep.subr.mxu0 0.0
    %259 = vmatpush1.xpose.msra.mxu0 0.0
    %260 = vmatprep.subr.mxu0 0.0
    %261 = vmatpush1.xpose.msra.mxu0 0.0
    %262 = vmatprep.subr.mxu0 0.0
    %263 = vmatpush1.xpose.msra.mxu0 0.0
    %264 = vmatprep.subr.mxu0 0.0
    %265 = vmatpush1.xpose.msra.mxu0 0.0
    %266 = vmatprep.subr.mxu0 0.0
    %267 = vmatpush1.xpose.msra.mxu0 0.0
    %268 = vmatprep.subr.mxu0 0.0
    %269 = vmatpush1.xpose.msra.mxu0 0.0
    %270 = vmatprep.subr.mxu0 0.0
    %271 = vmatpush1.xpose.msra.mxu0 0.0
    %272 = vmatprep.subr.mxu0 0.0
    %273 = vmatpush1.xpose.msra.mxu0 0.0
    %274 = vmatprep.subr.mxu0 0.0
    %275 = vmatpush1.xpose.msra.mxu0 0.0
    %276 = vmatprep.subr.mxu0 0.0
    %277 = vmatpush1.xpose.msra.mxu0 0.0
    %278 = vmatprep.subr.mxu0 0.0
    %279 = vmatpush1.xpose.msra.mxu0 0.0
    %280 = vmatprep.subr.mxu0 0.0
    %281 = vmatpush1.xpose.msra.mxu0 0.0
    %282 = vmatprep.subr.mxu0 0.0
    %283 = vmatpush1.xpose.msra.mxu0 0.0
    %284 = vmatprep.subr.mxu0 0.0
    %285 = vmatpush1.xpose.msra.mxu0 0.0
    %286 = vmatprep.subr.mxu0 0.0
    %287 = vmatpush1.xpose.msra.mxu0 0.0
    %288 = vmatprep.subr.mxu0 0.0
    %289 = vmatpush1.xpose.msra.mxu0 0.0
    %290 = vmatprep.subr.mxu0 0.0
    %291 = vmatpush1.xpose.msra.mxu0 0.0
    %292 = vmatprep.subr.mxu0 0.0
    %293 = vmatpush1.xpose.msra.mxu0 0.0
    %294 = vmatprep.subr.mxu0 0.0
    %295 = vmatpush1.xpose.msra.mxu0 0.0
    %296 = vmatprep.subr.mxu0 0.0
    %297 = vmatpush1.xpose.msra.mxu0 0.0
    %298 = vmatprep.subr.mxu0 0.0
    %299 = vmatpush1.xpose.msra.mxu0 0.0
    %300 = vmatprep.subr.mxu0 0.0
    %301 = vmatpush1.xpose.msra.mxu0 0.0
    %302 = vmatprep.subr.mxu0 0.0
    %303 = vmatpush1.xpose.msra.mxu0 0.0
    %304 = vmatprep.mubr.f32.mxu0 0.0
    %305 = vmatmul.mubr.f32.gmra.mrb[0].mxu0 %v206
    %v306 = vpop.f32.mrb[0].mxu0
    %v307 = vadd.f32 0.0, %v306
    %v308 = vpop.f32.mrb[0].mxu0
    %309 = vdwg.mxu0
    %310 = vmatprep.subr.mxu0 0.0
    %311 = vmatpush1.xpose.msra.mxu0 %v89
    %312 = vmatprep.subr.mxu0 0.0
    %313 = vmatpush1.xpose.msra.mxu0 0.0
    %314 = vmatprep.subr.mxu0 0.0
    %315 = vmatpush1.xpose.msra.mxu0 0.0
    %316 = vmatprep.subr.mxu0 0.0
    %317 = vmatpush1.xpose.msra.mxu0 0.0
    %318 = vmatprep.subr.mxu0 0.0
    %319 = vmatpush1.xpose.msra.mxu0 0.0
    %320 = vmatprep.subr.mxu0 0.0
    %321 = vmatpush1.xpose.msra.mxu0 0.0
    %322 = vmatprep.subr.mxu0 0.0
    %323 = vmatpush1.xpose.msra.mxu0 0.0
    %324 = vmatprep.subr.mxu0 0.0
    %325 = vmatpush1.xpose.msra.mxu0 0.0
    %326 = vmatprep.subr.mxu0 0.0
    %327 = vmatpush1.xpose.msra.mxu0 0.0
    %328 = vmatprep.subr.mxu0 0.0
    %329 = vmatpush1.xpose.msra.mxu0 0.0
    %330 = vmatprep.subr.mxu0 0.0
    %331 = vmatpush1.xpose.msra.mxu0 0.0
    %332 = vmatprep.subr.mxu0 0.0
    %333 = vmatpush1.xpose.msra.mxu0 0.0
    %334 = vmatprep.subr.mxu0 0.0
    %335 = vmatpush1.xpose.msra.mxu0 0.0
    %336 = vmatprep.subr.mxu0 0.0
    %337 = vmatpush1.xpose.msra.mxu0 0.0
    %338 = vmatprep.subr.mxu0 0.0
    %339 = vmatpush1.xpose.msra.mxu0 0.0
    %340 = vmatprep.subr.mxu0 0.0
    %341 = vmatpush1.xpose.msra.mxu0 0.0
    %342 = vmatprep.subr.mxu0 0.0
    %343 = vmatpush1.xpose.msra.mxu0 0.0
    %344 = vmatprep.subr.mxu0 0.0
    %345 = vmatpush1.xpose.msra.mxu0 0.0
    %346 = vmatprep.subr.mxu0 0.0
    %347 = vmatpush1.xpose.msra.mxu0 0.0
    %348 = vmatprep.subr.mxu0 0.0
    %349 = vmatpush1.xpose.msra.mxu0 0.0
    %350 = vmatprep.subr.mxu0 0.0
    %351 = vmatpush1.xpose.msra.mxu0 0.0
    %352 = vmatprep.subr.mxu0 0.0
    %353 = vmatpush1.xpose.msra.mxu0 0.0
    %354 = vmatprep.subr.mxu0 0.0
    %355 = vmatpush1.xpose.msra.mxu0 0.0
    %356 = vmatprep.subr.mxu0 0.0
    %357 = vmatpush1.xpose.msra.mxu0 0.0
    %358 = vmatprep.subr.mxu0 0.0
    %359 = vmatpush1.xpose.msra.mxu0 0.0
    %360 = vmatprep.subr.mxu0 0.0
    %361 = vmatpush1.xpose.msra.mxu0 0.0
    %362 = vmatprep.subr.mxu0 0.0
    %363 = vmatpush1.xpose.msra.mxu0 0.0
    %364 = vmatprep.subr.mxu0 0.0
    %365 = vmatpush1.xpose.msra.mxu0 0.0
    %366 = vmatprep.subr.mxu0 0.0
    %367 = vmatpush1.xpose.msra.mxu0 0.0
    %368 = vmatprep.subr.mxu0 0.0
    %369 = vmatpush1.xpose.msra.mxu0 0.0
    %370 = vmatprep.subr.mxu0 0.0
    %371 = vmatpush1.xpose.msra.mxu0 0.0
    %372 = vmatprep.subr.mxu0 0.0
    %373 = vmatpush1.xpose.msra.mxu0 0.0
    %374 = vmatprep.mubr.f32.mxu0 0.0
    %375 = vmatmul.mubr.f32.gmra.mrb[0].mxu0 %v220
    %v376 = vpop.f32.mrb[0].mxu0
    %v377 = vadd.f32 0.0, %v376
    %v378 = vpop.f32.mrb[0].mxu0
    %379 = vdwg.mxu0
    %380 = vmatprep.subr.mxu0 0.0
    %381 = vmatpush1.xpose.msra.mxu0 %v90
    %382 = vmatprep.subr.mxu0 0.0
    %383 = vmatpush1.xpose.msra.mxu0 0.0
    %384 = vmatprep.subr.mxu0 0.0
    %385 = vmatpush1.xpose.msra.mxu0 0.0
    %386 = vmatprep.subr.mxu0 0.0
    %387 = vmatpush1.xpose.msra.mxu0 0.0
    %388 = vmatprep.subr.mxu0 0.0
    %389 = vmatpush1.xpose.msra.mxu0 0.0
    %390 = vmatprep.subr.mxu0 0.0
    %391 = vmatpush1.xpose.msra.mxu0 0.0
    %392 = vmatprep.subr.mxu0 0.0
    %393 = vmatpush1.xpose.msra.mxu0 0.0
    %394 = vmatprep.subr.mxu0 0.0
    %395 = vmatpush1.xpose.msra.mxu0 0.0
    %396 = vmatprep.subr.mxu0 0.0
    %397 = vmatpush1.xpose.msra.mxu0 0.0
    %398 = vmatprep.subr.mxu0 0.0
    %399 = vmatpush1.xpose.msra.mxu0 0.0
    %400 = vmatprep.subr.mxu0 0.0
    %401 = vmatpush1.xpose.msra.mxu0 0.0
    %402 = vmatprep.subr.mxu0 0.0
    %403 = vmatpush1.xpose.msra.mxu0 0.0
    %404 = vmatprep.subr.mxu0 0.0
    %405 = vmatpush1.xpose.msra.mxu0 0.0
    %406 = vmatprep.subr.mxu0 0.0
    %407 = vmatpush1.xpose.msra.mxu0 0.0
    %408 = vmatprep.subr.mxu0 0.0
    %409 = vmatpush1.xpose.msra.mxu0 0.0
    %410 = vmatprep.subr.mxu0 0.0
    %411 = vmatpush1.xpose.msra.mxu0 0.0
    %412 = vmatprep.subr.mxu0 0.0
    %413 = vmatpush1.xpose.msra.mxu0 0.0
    %414 = vmatprep.subr.mxu0 0.0
    %415 = vmatpush1.xpose.msra.mxu0 0.0
    %416 = vmatprep.subr.mxu0 0.0
    %417 = vmatpush1.xpose.msra.mxu0 0.0
    %418 = vmatprep.subr.mxu0 0.0
    %419 = vmatpush1.xpose.msra.mxu0 0.0
    %420 = vmatprep.subr.mxu0 0.0
    %421 = vmatpush1.xpose.msra.mxu0 0.0
    %422 = vmatprep.subr.mxu0 0.0
    %423 = vmatpush1.xpose.msra.mxu0 0.0
    %424 = vmatprep.subr.mxu0 0.0
    %425 = vmatpush1.xpose.msra.mxu0 0.0
    %426 = vmatprep.subr.mxu0 0.0
    %427 = vmatpush1.xpose.msra.mxu0 0.0
    %428 = vmatprep.subr.mxu0 0.0
    %429 = vmatpush1.xpose.msra.mxu0 0.0
    %430 = vmatprep.subr.mxu0 0.0
    %431 = vmatpush1.xpose.msra.mxu0 0.0
    %432 = vmatprep.subr.mxu0 0.0
    %433 = vmatpush1.xpose.msra.mxu0 0.0
    %434 = vmatprep.subr.mxu0 0.0
    %435 = vmatpush1.xpose.msra.mxu0 0.0
    %436 = vmatprep.subr.mxu0 0.0
    %437 = vmatpush1.xpose.msra.mxu0 0.0
    %438 = vmatprep.subr.mxu0 0.0
    %439 = vmatpush1.xpose.msra.mxu0 0.0
    %440 = vmatprep.subr.mxu0 0.0
    %441 = vmatpush1.xpose.msra.mxu0 0.0
    %442 = vmatprep.subr.mxu0 0.0
    %443 = vmatpush1.xpose.msra.mxu0 0.0
    %444 = vmatprep.mubr.f32.mxu0 0.0
    %445 = vmatmul.mubr.f32.gmra.mrb[0].mxu0 %v228
    %v446 = vpop.f32.mrb[0].mxu0
    %v447 = vadd.f32 0.0, %v446
    %v448 = vpop.f32.mrb[0].mxu0
    %449 = vdwg.mxu0
    %450 = vmatprep.subr.mxu0 0.0
    %451 = vmatpush1.xpose.msra.mxu0 %v91
    %452 = vmatprep.subr.mxu0 0.0
    %453 = vmatpush1.xpose.msra.mxu0 0.0
    %454 = vmatprep.subr.mxu0 0.0
    %455 = vmatpush1.xpose.msra.mxu0 0.0
    %456 = vmatprep.subr.mxu0 0.0
    %457 = vmatpush1.xpose.msra.mxu0 0.0
    %458 = vmatprep.subr.mxu0 0.0
    %459 = vmatpush1.xpose.msra.mxu0 0.0
    %460 = vmatprep.subr.mxu0 0.0
    %461 = vmatpush1.xpose.msra.mxu0 0.0
    %462 = vmatprep.subr.mxu0 0.0
    %463 = vmatpush1.xpose.msra.mxu0 0.0
    %464 = vmatprep.subr.mxu0 0.0
    %465 = vmatpush1.xpose.msra.mxu0 0.0
    %466 = vmatprep.subr.mxu0 0.0
    %467 = vmatpush1.xpose.msra.mxu0 0.0
    %468 = vmatprep.subr.mxu0 0.0
    %469 = vmatpush1.xpose.msra.mxu0 0.0
    %470 = vmatprep.subr.mxu0 0.0
    %471 = vmatpush1.xpose.msra.mxu0 0.0
    %472 = vmatprep.subr.mxu0 0.0
    %473 = vmatpush1.xpose.msra.mxu0 0.0
    %474 = vmatprep.subr.mxu0 0.0
    %475 = vmatpush1.xpose.msra.mxu0 0.0
    %476 = vmatprep.subr.mxu0 0.0
    %477 = vmatpush1.xpose.msra.mxu0 0.0
    %478 = vmatprep.subr.mxu0 0.0
    %479 = vmatpush1.xpose.msra.mxu0 0.0
    %480 = vmatprep.subr.mxu0 0.0
    %481 = vmatpush1.xpose.msra.mxu0 0.0
    %482 = vmatprep.subr.mxu0 0.0
    %483 = vmatpush1.xpose.msra.mxu0 0.0
    %484 = vmatprep.subr.mxu0 0.0
    %485 = vmatpush1.xpose.msra.mxu0 0.0
    %486 = vmatprep.subr.mxu0 0.0
    %487 = vmatpush1.xpose.msra.mxu0 0.0
    %488 = vmatprep.subr.mxu0 0.0
    %489 = vmatpush1.xpose.msra.mxu0 0.0
    %490 = vmatprep.subr.mxu0 0.0
    %491 = vmatpush1.xpose.msra.mxu0 0.0
    %492 = vmatprep.subr.mxu0 0.0
    %493 = vmatpush1.xpose.msra.mxu0 0.0
    %494 = vmatprep.subr.mxu0 0.0
    %495 = vmatpush1.xpose.msra.mxu0 0.0
    %496 = vmatprep.subr.mxu0 0.0
    %497 = vmatpush1.xpose.msra.mxu0 0.0
    %498 = vmatprep.subr.mxu0 0.0
    %499 = vmatpush1.xpose.msra.mxu0 0.0
    %500 = vmatprep.subr.mxu0 0.0
    %501 = vmatpush1.xpose.msra.mxu0 0.0
    %502 = vmatprep.subr.mxu0 0.0
    %503 = vmatpush1.xpose.msra.mxu0 0.0
    %504 = vmatprep.subr.mxu0 0.0
    %505 = vmatpush1.xpose.msra.mxu0 0.0
    %506 = vmatprep.subr.mxu0 0.0
    %507 = vmatpush1.xpose.msra.mxu0 0.0
    %508 = vmatprep.subr.mxu0 0.0
    %509 = vmatpush1.xpose.msra.mxu0 0.0
    %510 = vmatprep.subr.mxu0 0.0
    %511 = vmatpush1.xpose.msra.mxu0 0.0
    %512 = vmatprep.subr.mxu0 0.0
    %513 = vmatpush1.xpose.msra.mxu0 0.0
    %514 = vmatprep.mubr.f32.mxu0 0.0
    %515 = vmatmul.mubr.f32.gmra.mrb[0].mxu0 %v230
    %v516 = vpop.f32.mrb[0].mxu0
    %v517 = vadd.f32 0.0, %v516
    %v518 = vpop.f32.mrb[0].mxu0
    %519 = vdwg.mxu0
    %520 = vmatprep.subr.mxu0 0.0
    %521 = vmatpush1.xpose.msra.mxu0 %v92
    %522 = vmatprep.subr.mxu0 0.0
    %523 = vmatpush1.xpose.msra.mxu0 0.0
    %524 = vmatprep.subr.mxu0 0.0
    %525 = vmatpush1.xpose.msra.mxu0 0.0
    %526 = vmatprep.subr.mxu0 0.0
    %527 = vmatpush1.xpose.msra.mxu0 0.0
    %528 = vmatprep.subr.mxu0 0.0
    %529 = vmatpush1.xpose.msra.mxu0 0.0
    %530 = vmatprep.subr.mxu0 0.0
    %531 = vmatpush1.xpose.msra.mxu0 0.0
    %532 = vmatprep.subr.mxu0 0.0
    %533 = vmatpush1.xpose.msra.mxu0 0.0
    %534 = vmatprep.subr.mxu0 0.0
    %535 = vmatpush1.xpose.msra.mxu0 0.0
    %536 = vmatprep.subr.mxu0 0.0
    %537 = vmatpush1.xpose.msra.mxu0 0.0
    %538 = vmatprep.subr.mxu0 0.0
    %539 = vmatpush1.xpose.msra.mxu0 0.0
    %540 = vmatprep.subr.mxu0 0.0
    %541 = vmatpush1.xpose.msra.mxu0 0.0
    %542 = vmatprep.subr.mxu0 0.0
    %543 = vmatpush1.xpose.msra.mxu0 0.0
    %544 = vmatprep.subr.mxu0 0.0
    %545 = vmatpush1.xpose.msra.mxu0 0.0
    %546 = vmatprep.subr.mxu0 0.0
    %547 = vmatpush1.xpose.msra.mxu0 0.0
    %548 = vmatprep.subr.mxu0 0.0
    %549 = vmatpush1.xpose.msra.mxu0 0.0
    %550 = vmatprep.subr.mxu0 0.0
    %551 = vmatpush1.xpose.msra.mxu0 0.0
    %552 = vmatprep.subr.mxu0 0.0
    %553 = vmatpush1.xpose.msra.mxu0 0.0
    %554 = vmatprep.subr.mxu0 0.0
    %555 = vmatpush1.xpose.msra.mxu0 0.0
    %556 = vmatprep.subr.mxu0 0.0
    %557 = vmatpush1.xpose.msra.mxu0 0.0
    %558 = vmatprep.subr.mxu0 0.0
    %559 = vmatpush1.xpose.msra.mxu0 0.0
    %560 = vmatprep.subr.mxu0 0.0
    %561 = vmatpush1.xpose.msra.mxu0 0.0
    %562 = vmatprep.subr.mxu0 0.0
    %563 = vmatpush1.xpose.msra.mxu0 0.0
    %564 = vmatprep.subr.mxu0 0.0
    %565 = vmatpush1.xpose.msra.mxu0 0.0
    %566 = vmatprep.subr.mxu0 0.0
    %567 = vmatpush1.xpose.msra.mxu0 0.0
    %568 = vmatprep.subr.mxu0 0.0
    %569 = vmatpush1.xpose.msra.mxu0 0.0
    %570 = vmatprep.subr.mxu0 0.0
    %571 = vmatpush1.xpose.msra.mxu0 0.0
    %572 = vmatprep.subr.mxu0 0.0
    %573 = vmatpush1.xpose.msra.mxu0 0.0
    %574 = vmatprep.subr.mxu0 0.0
    %575 = vmatpush1.xpose.msra.mxu0 0.0
    %576 = vmatprep.subr.mxu0 0.0
    %577 = vmatpush1.xpose.msra.mxu0 0.0
    %578 = vmatprep.subr.mxu0 0.0
    %579 = vmatpush1.xpose.msra.mxu0 0.0
    %580 = vmatprep.subr.mxu0 0.0
    %581 = vmatpush1.xpose.msra.mxu0 0.0
    %582 = vmatprep.subr.mxu0 0.0
    %583 = vmatpush1.xpose.msra.mxu0 0.0
    %584 = vmatprep.mubr.f32.mxu0 0.0
    %585 = vmatmul.mubr.f32.gmra.mrb[0].mxu0 %v213
    %v586 = vpop.f32.mrb[0].mxu0
    %v587 = vadd.f32 0.0, %v586
    %v588 = vpop.f32.mrb[0].mxu0
    %589 = vdwg.mxu0
    %590 = vmatprep.subr.mxu0 0.0
    %591 = vmatpush1.xpose.msra.mxu0 %v93
    %592 = vmatprep.subr.mxu0 0.0
    %593 = vmatpush1.xpose.msra.mxu0 0.0
    %594 = vmatprep.subr.mxu0 0.0
    %595 = vmatpush1.xpose.msra.mxu0 0.0
    %596 = vmatprep.subr.mxu0 0.0
    %597 = vmatpush1.xpose.msra.mxu0 0.0
    %598 = vmatprep.subr.mxu0 0.0
    %599 = vmatpush1.xpose.msra.mxu0 0.0
    %600 = vmatprep.subr.mxu0 0.0
    %601 = vmatpush1.xpose.msra.mxu0 0.0
    %602 = vmatprep.subr.mxu0 0.0
    %603 = vmatpush1.xpose.msra.mxu0 0.0
    %604 = vmatprep.subr.mxu0 0.0
    %605 = vmatpush1.xpose.msra.mxu0 0.0
    %606 = vmatprep.subr.mxu0 0.0
    %607 = vmatpush1.xpose.msra.mxu0 0.0
    %608 = vmatprep.subr.mxu0 0.0
    %609 = vmatpush1.xpose.msra.mxu0 0.0
    %610 = vmatprep.subr.mxu0 0.0
    %611 = vmatpush1.xpose.msra.mxu0 0.0
    %612 = vmatprep.subr.mxu0 0.0
    %613 = vmatpush1.xpose.msra.mxu0 0.0
    %614 = vmatprep.subr.mxu0 0.0
    %615 = vmatpush1.xpose.msra.mxu0 0.0
    %616 = vmatprep.subr.mxu0 0.0
    %617 = vmatpush1.xpose.msra.mxu0 0.0
    %618 = vmatprep.subr.mxu0 0.0
    %619 = vmatpush1.xpose.msra.mxu0 0.0
    %620 = vmatprep.subr.mxu0 0.0
    %621 = vmatpush1.xpose.msra.mxu0 0.0
    %622 = vmatprep.subr.mxu0 0.0
    %623 = vmatpush1.xpose.msra.mxu0 0.0
    %624 = vmatprep.subr.mxu0 0.0
    %625 = vmatpush1.xpose.msra.mxu0 0.0
    %626 = vmatprep.subr.mxu0 0.0
    %627 = vmatpush1.xpose.msra.mxu0 0.0
    %628 = vmatprep.subr.mxu0 0.0
    %629 = vmatpush1.xpose.msra.mxu0 0.0
    %630 = vmatprep.subr.mxu0 0.0
    %631 = vmatpush1.xpose.msra.mxu0 0.0
    %632 = vmatprep.subr.mxu0 0.0
    %633 = vmatpush1.xpose.msra.mxu0 0.0
    %634 = vmatprep.subr.mxu0 0.0
    %635 = vmatpush1.xpose.msra.mxu0 0.0
    %636 = vmatprep.subr.mxu0 0.0
    %637 = vmatpush1.xpose.msra.mxu0 0.0
    %638 = vmatprep.subr.mxu0 0.0
    %639 = vmatpush1.xpose.msra.mxu0 0.0
    %640 = vmatprep.subr.mxu0 0.0
    %641 = vmatpush1.xpose.msra.mxu0 0.0
    %642 = vmatprep.subr.mxu0 0.0
    %643 = vmatpush1.xpose.msra.mxu0 0.0
    %644 = vmatprep.subr.mxu0 0.0
    %645 = vmatpush1.xpose.msra.mxu0 0.0
    %646 = vmatprep.subr.mxu0 0.0
    %647 = vmatpush1.xpose.msra.mxu0 0.0
    %648 = vmatprep.subr.mxu0 0.0
    %649 = vmatpush1.xpose.msra.mxu0 0.0
    %650 = vmatprep.subr.mxu0 0.0
    %651 = vmatpush1.xpose.msra.mxu0 0.0
    %652 = vmatprep.subr.mxu0 0.0
    %653 = vmatpush1.xpose.msra.mxu0 0.0
    %654 = vmatprep.mubr.f32.mxu0 0.0
    %655 = vmatmul.mubr.f32.gmra.mrb[0].mxu0 %v227
    %v656 = vpop.f32.mrb[0].mxu0
    %v657 = vadd.f32 0.0, %v656
    %v658 = vpop.f32.mrb[0].mxu0
    %659 = vdwg.mxu0
    %660 = vmatprep.subr.mxu0 0.0
    %661 = vmatpush1.xpose.msra.mxu0 %v94
    %662 = vmatprep.subr.mxu0 0.0
    %663 = vmatpush1.xpose.msra.mxu0 0.0
    %664 = vmatprep.subr.mxu0 0.0
    %665 = vmatpush1.xpose.msra.mxu0 0.0
    %666 = vmatprep.subr.mxu0 0.0
    %667 = vmatpush1.xpose.msra.mxu0 0.0
    %668 = vmatprep.subr.mxu0 0.0
    %669 = vmatpush1.xpose.msra.mxu0 0.0
    %670 = vmatprep.subr.mxu0 0.0
    %671 = vmatpush1.xpose.msra.mxu0 0.0
    %672 = vmatprep.subr.mxu0 0.0
    %673 = vmatpush1.xpose.msra.mxu0 0.0
    %674 = vmatprep.subr.mxu0 0.0
    %675 = vmatpush1.xpose.msra.mxu0 0.0
    %676 = vmatprep.subr.mxu0 0.0
    %677 = vmatpush1.xpose.msra.mxu0 0.0
    %678 = vmatprep.subr.mxu0 0.0
    %679 = vmatpush1.xpose.msra.mxu0 0.0
    %680 = vmatprep.subr.mxu0 0.0
    %681 = vmatpush1.xpose.msra.mxu0 0.0
    %682 = vmatprep.subr.mxu0 0.0
    %683 = vmatpush1.xpose.msra.mxu0 0.0
    %684 = vmatprep.subr.mxu0 0.0
    %685 = vmatpush1.xpose.msra.mxu0 0.0
    %686 = vmatprep.subr.mxu0 0.0
    %687 = vmatpush1.xpose.msra.mxu0 0.0
    %688 = vmatprep.subr.mxu0 0.0
    %689 = vmatpush1.xpose.msra.mxu0 0.0
    %690 = vmatprep.subr.mxu0 0.0
    %691 = vmatpush1.xpose.msra.mxu0 0.0
    %692 = vmatprep.subr.mxu0 0.0
    %693 = vmatpush1.xpose.msra.mxu0 0.0
    %694 = vmatprep.subr.mxu0 0.0
    %695 = vmatpush1.xpose.msra.mxu0 0.0
    %696 = vmatprep.subr.mxu0 0.0
    %697 = vmatpush1.xpose.msra.mxu0 0.0
    %698 = vmatprep.subr.mxu0 0.0
    %699 = vmatpush1.xpose.msra.mxu0 0.0
    %700 = vmatprep.subr.mxu0 0.0
    %701 = vmatpush1.xpose.msra.mxu0 0.0
    %702 = vmatprep.subr.mxu0 0.0
    %703 = vmatpush1.xpose.msra.mxu0 0.0
    %704 = vmatprep.subr.mxu0 0.0
    %705 = vmatpush1.xpose.msra.mxu0 0.0
    %706 = vmatprep.subr.mxu0 0.0
    %707 = vmatpush1.xpose.msra.mxu0 0.0
    %708 = vmatprep.subr.mxu0 0.0
    %709 = vmatpush1.xpose.msra.mxu0 0.0
    %710 = vmatprep.subr.mxu0 0.0
    %711 = vmatpush1.xpose.msra.mxu0 0.0
    %712 = vmatprep.subr.mxu0 0.0
    %713 = vmatpush1.xpose.msra.mxu0 0.0
    %714 = vmatprep.subr.mxu0 0.0
    %715 = vmatpush1.xpose.msra.mxu0 0.0
    %716 = vmatprep.subr.mxu0 0.0
    %717 = vmatpush1.xpose.msra.mxu0 0.0
    %718 = vmatprep.subr.mxu0 0.0
    %719 = vmatpush1.xpose.msra.mxu0 0.0
    %720 = vmatprep.subr.mxu0 0.0
    %721 = vmatpush1.xpose.msra.mxu0 0.0
    %722 = vmatprep.subr.mxu0 0.0
    %723 = vmatpush1.xpose.msra.mxu0 0.0
    %724 = vmatprep.mubr.f32.mxu0 0.0
    %725 = vmatmul.mubr.f32.gmra.mrb[0].mxu0 %v229
    %v726 = vpop.f32.mrb[0].mxu0
    %v727 = vadd.f32 0.0, %v726
    %v728 = vpop.f32.mrb[0].mxu0
    %729 = vdwg.mxu0
    %730 = vmatprep.subr.mxu0 0.0
    %731 = vmatpush1.xpose.msra.mxu0 %v95
    %732 = vmatprep.subr.mxu0 0.0
    %733 = vmatpush1.xpose.msra.mxu0 0.0
    %734 = vmatprep.subr.mxu0 0.0
    %735 = vmatpush1.xpose.msra.mxu0 0.0
    %736 = vmatprep.subr.mxu0 0.0
    %737 = vmatpush1.xpose.msra.mxu0 0.0
    %738 = vmatprep.subr.mxu0 0.0
    %739 = vmatpush1.xpose.msra.mxu0 0.0
    %740 = vmatprep.subr.mxu0 0.0
    %741 = vmatpush1.xpose.msra.mxu0 0.0
    %742 = vmatprep.subr.mxu0 0.0
    %743 = vmatpush1.xpose.msra.mxu0 0.0
    %744 = vmatprep.subr.mxu0 0.0
    %745 = vmatpush1.xpose.msra.mxu0 0.0
    %746 = vmatprep.subr.mxu0 0.0
    %747 = vmatpush1.xpose.msra.mxu0 0.0
    %748 = vmatprep.subr.mxu0 0.0
    %749 = vmatpush1.xpose.msra.mxu0 0.0
    %750 = vmatprep.subr.mxu0 0.0
    %751 = vmatpush1.xpose.msra.mxu0 0.0
    %752 = vmatprep.subr.mxu0 0.0
    %753 = vmatpush1.xpose.msra.mxu0 0.0
    %754 = vmatprep.subr.mxu0 0.0
    %755 = vmatpush1.xpose.msra.mxu0 0.0
    %756 = vmatprep.subr.mxu0 0.0
    %757 = vmatpush1.xpose.msra.mxu0 0.0
    %758 = vmatprep.subr.mxu0 0.0
    %759 = vmatpush1.xpose.msra.mxu0 0.0
    %760 = vmatprep.subr.mxu0 0.0
    %761 = vmatpush1.xpose.msra.mxu0 0.0
    %762 = vmatprep.subr.mxu0 0.0
    %763 = vmatpush1.xpose.msra.mxu0 0.0
    %764 = vmatprep.subr.mxu0 0.0
    %765 = vmatpush1.xpose.msra.mxu0 0.0
    %766 = vmatprep.subr.mxu0 0.0
    %767 = vmatpush1.xpose.msra.mxu0 0.0
    %768 = vmatprep.subr.mxu0 0.0
    %769 = vmatpush1.xpose.msra.mxu0 0.0
    %770 = vmatprep.subr.mxu0 0.0
    %771 = vmatpush1.xpose.msra.mxu0 0.0
    %772 = vmatprep.subr.mxu0 0.0
    %773 = vmatpush1.xpose.msra.mxu0 0.0
    %774 = vmatprep.subr.mxu0 0.0
    %775 = vmatpush1.xpose.msra.mxu0 0.0
    %776 = vmatprep.subr.mxu0 0.0
    %777 = vmatpush1.xpose.msra.mxu0 0.0
    %778 = vmatprep.subr.mxu0 0.0
    %779 = vmatpush1.xpose.msra.mxu0 0.0
    %780 = vmatprep.subr.mxu0 0.0
    %781 = vmatpush1.xpose.msra.mxu0 0.0
    %782 = vmatprep.subr.mxu0 0.0
    %783 = vmatpush1.xpose.msra.mxu0 0.0
    %784 = vmatprep.subr.mxu0 0.0
    %785 = vmatpush1.xpose.msra.mxu0 0.0
    %786 = vmatprep.subr.mxu0 0.0
    %787 = vmatpush1.xpose.msra.mxu0 0.0
    %788 = vmatprep.subr.mxu0 0.0
    %789 = vmatpush1.xpose.msra.mxu0 0.0
    %790 = vmatprep.subr.mxu0 0.0
    %791 = vmatpush1.xpose.msra.mxu0 0.0
    %792 = vmatprep.subr.mxu0 0.0
    %793 = vmatpush1.xpose.msra.mxu0 0.0
    %794 = vmatprep.mubr.f32.mxu0 0.0
    %795 = vmatmul.mubr.f32.gmra.mrb[0].mxu0 %v231
    %v796 = vpop.f32.mrb[0].mxu0
    %v797 = vadd.f32 0.0, %v796
    %v798 = vpop.f32.mrb[0].mxu0
    %799 = vdwg.mxu0
    %vm800 = vcmask 57344
    %v801 = vsel %vm800, %v307, -inf
    %802 = vmax.xlane.f32.xlu0 %v801
    %v803 = vpop.xlane.xlu0 %802
    %v804 = vsel %vm800, %v377, -inf
    %805 = vmax.xlane.f32.xlu0 %v804
    %v806 = vpop.xlane.xlu0 %805
    %v807 = vsel %vm800, %v447, -inf
    %808 = vmax.xlane.f32.xlu0 %v807
    %v809 = vpop.xlane.xlu0 %808
    %v810 = vsel %vm800, %v517, -inf
    %811 = vmax.xlane.f32.xlu0 %v810
    %v812 = vpop.xlane.xlu0 %811
    %v813 = vsel %vm800, %v587, -inf
    %814 = vmax.xlane.f32.xlu0 %v813
    %v815 = vpop.xlane.xlu0 %814
    %v816 = vsel %vm800, %v657, -inf
    %817 = vmax.xlane.f32.xlu0 %v816
    %v818 = vpop.xlane.xlu0 %817
    %v819 = vsel %vm800, %v727, -inf
    %820 = vmax.xlane.f32.xlu0 %v819
    %v821 = vpop.xlane.xlu0 %820
    %v822 = vsel %vm800, %v797, -inf
    %823 = vmax.xlane.f32.xlu0 %v822
    %v824 = vpop.xlane.xlu0 %823
    %v825 = vsub.f32 %v307, %v803
    %v826 = vsub.f32 %v377, %v806
    %v827 = vsub.f32 %v447, %v809
    %v828 = vsub.f32 %v517, %v812
    %v829 = vsub.f32 %v587, %v815
    %v830 = vsub.f32 %v657, %v818
    %v831 = vsub.f32 %v727, %v821
    %v832 = vsub.f32 %v797, %v824
    %v833 = vmul.f32 %v825, 1.442695
    %v834 = vpow.pop %v833
    %v835 = vmul.f32 %v826, 1.442695
    %v836 = vpow.pop %v835
    %v837 = vmul.f32 %v827, 1.442695
    %v838 = vpow.pop %v837
    %v839 = vmul.f32 %v828, 1.442695
    %v840 = vpow.pop %v839
    %v841 = vmul.f32 %v829, 1.442695
    %v842 = vpow.pop %v841
    %v843 = vmul.f32 %v830, 1.442695
    %v844 = vpow.pop %v843
    %v845 = vmul.f32 %v831, 1.442695
    %v846 = vpow.pop %v845
    %v847 = vmul.f32 %v832, 1.442695
    %v848 = vpow.pop %v847
    %v849 = vsel %vm800, %v834, 0.0
    %850 = vadd.xlane.f32.xlu0 %v849
    %v851 = vpop.xlane.xlu0 %850
    %v852 = vsel %vm800, %v836, 0.0
    %853 = vadd.xlane.f32.xlu0 %v852
    %v854 = vpop.xlane.xlu0 %853
    %v855 = vsel %vm800, %v838, 0.0
    %856 = vadd.xlane.f32.xlu0 %v855
    %v857 = vpop.xlane.xlu0 %856
    %v858 = vsel %vm800, %v840, 0.0
    %859 = vadd.xlane.f32.xlu0 %v858
    %v860 = vpop.xlane.xlu0 %859
    %v861 = vsel %vm800, %v842, 0.0
    %862 = vadd.xlane.f32.xlu0 %v861
    %v863 = vpop.xlane.xlu0 %862
    %v864 = vsel %vm800, %v844, 0.0
    %865 = vadd.xlane.f32.xlu0 %v864
    %v866 = vpop.xlane.xlu0 %865
    %v867 = vsel %vm800, %v846, 0.0
    %868 = vadd.xlane.f32.xlu0 %v867
    %v869 = vpop.xlane.xlu0 %868
    %v870 = vsel %vm800, %v848, 0.0
    %871 = vadd.xlane.f32.xlu0 %v870
    %v872 = vpop.xlane.xlu0 %871
    %v873 = vrcp.pop %v851
    %v874 = vrcp.pop %v854
    %v875 = vrcp.pop %v857
    %v876 = vrcp.pop %v860
    %v877 = vrcp.pop %v863
    %v878 = vrcp.pop %v866
    %v879 = vrcp.pop %v869
    %v880 = vrcp.pop %v872
    %v881 = vmul.f32 %v834, %v873
    %v882 = vmul.f32 %v836, %v874
    %v883 = vmul.f32 %v838, %v875
    %v884 = vmul.f32 %v840, %v876
    %v885 = vmul.f32 %v842, %v877
    %v886 = vmul.f32 %v844, %v878
    %v887 = vmul.f32 %v846, %v879
    %v888 = vmul.f32 %v848, %v880
    %vm889 = vcmask 64512
    %v891 = vsel %vm889, %v881, 0
    %893 = vmatprep.subr.mxu0 0.0
    %894 = vmatpush1.msra.mxu0 %v88
    %895 = vmatprep.subr.mxu0 0.0
    %896 = vmatpush1.msra.mxu0 0.0
    %897 = vmatprep.subr.mxu0 0.0
    %898 = vmatpush1.msra.mxu0 0.0
    %899 = vmatprep.subr.mxu0 0.0
    %900 = vmatpush1.msra.mxu0 0.0
    %901 = vmatprep.subr.mxu0 0.0
    %902 = vmatpush1.msra.mxu0 0.0
    %903 = vmatprep.subr.mxu0 0.0
    %904 = vmatpush1.msra.mxu0 0.0
    %905 = vmatprep.subr.mxu0 0.0
    %906 = vmatpush1.msra.mxu0 0.0
    %907 = vmatprep.subr.mxu0 0.0
    %908 = vmatpush1.msra.mxu0 0.0
    %909 = vmatprep.subr.mxu0 0.0
    %910 = vmatpush1.msra.mxu0 0.0
    %911 = vmatprep.subr.mxu0 0.0
    %912 = vmatpush1.msra.mxu0 0.0
    %913 = vmatprep.subr.mxu0 0.0
    %914 = vmatpush1.msra.mxu0 0.0
    %915 = vmatprep.subr.mxu0 0.0
    %916 = vmatpush1.msra.mxu0 0.0
    %917 = vmatprep.subr.mxu0 0.0
    %918 = vmatpush1.msra.mxu0 0.0
    %919 = vmatprep.subr.mxu0 0.0
    %920 = vmatpush1.msra.mxu0 0.0
    %921 = vmatprep.subr.mxu0 0.0
    %922 = vmatpush1.msra.mxu0 0.0
    %923 = vmatprep.subr.mxu0 0.0
    %924 = vmatpush1.msra.mxu0 0.0
    %925 = vmatprep.subr.mxu0 0.0
    %926 = vmatpush1.msra.mxu0 0.0
    %927 = vmatprep.subr.mxu0 0.0
    %928 = vmatpush1.msra.mxu0 0.0
    %929 = vmatprep.subr.mxu0 0.0
    %930 = vmatpush1.msra.mxu0 0.0
    %931 = vmatprep.subr.mxu0 0.0
    %932 = vmatpush1.msra.mxu0 0.0
    %933 = vmatprep.subr.mxu0 0.0
    %934 = vmatpush1.msra.mxu0 0.0
    %935 = vmatprep.subr.mxu0 0.0
    %936 = vmatpush1.msra.mxu0 0.0
    %937 = vmatprep.subr.mxu0 0.0
    %938 = vmatpush1.msra.mxu0 0.0
    %939 = vmatprep.subr.mxu0 0.0
    %940 = vmatpush1.msra.mxu0 0.0
    %941 = vmatprep.subr.mxu0 0.0
    %942 = vmatpush1.msra.mxu0 0.0
    %943 = vmatprep.subr.mxu0 0.0
    %944 = vmatpush1.msra.mxu0 0.0
    %945 = vmatprep.subr.mxu0 0.0
    %946 = vmatpush1.msra.mxu0 0.0
    %947 = vmatprep.subr.mxu0 0.0
    %948 = vmatpush1.msra.mxu0 0.0
    %949 = vmatprep.subr.mxu0 0.0
    %950 = vmatpush1.msra.mxu0 0.0
    %951 = vmatprep.subr.mxu0 0.0
    %952 = vmatpush1.msra.mxu0 0.0
    %953 = vmatprep.subr.mxu0 0.0
    %954 = vmatpush1.msra.mxu0 0.0
    %955 = vmatprep.subr.mxu0 0.0
    %956 = vmatpush1.msra.mxu0 0.0
    %957 = vmatprep.mubr.f32.mxu0 0.0
    %958 = vmatmul.mubr.f32.gmra.mrb[0].mxu0 %v891
    %v959 = vpop.f32.mrb[0].mxu0
    %v960 = vadd.f32 0.0, %v959
    %v961 = vpop.f32.mrb[0].mxu0
    %962 = vdwg.mxu0
    %v964 = vsel %vm889, %v882, 0
    %966 = vmatprep.subr.mxu0 0.0
    %967 = vmatpush1.msra.mxu0 %v89
    %968 = vmatprep.subr.mxu0 0.0
    %969 = vmatpush1.msra.mxu0 0.0
    %970 = vmatprep.subr.mxu0 0.0
    %971 = vmatpush1.msra.mxu0 0.0
    %972 = vmatprep.subr.mxu0 0.0
    %973 = vmatpush1.msra.mxu0 0.0
    %974 = vmatprep.subr.mxu0 0.0
    %975 = vmatpush1.msra.mxu0 0.0
    %976 = vmatprep.subr.mxu0 0.0
    %977 = vmatpush1.msra.mxu0 0.0
    %978 = vmatprep.subr.mxu0 0.0
    %979 = vmatpush1.msra.mxu0 0.0
    %980 = vmatprep.subr.mxu0 0.0
    %981 = vmatpush1.msra.mxu0 0.0
    %982 = vmatprep.subr.mxu0 0.0
    %983 = vmatpush1.msra.mxu0 0.0
    %984 = vmatprep.subr.mxu0 0.0
    %985 = vmatpush1.msra.mxu0 0.0
    %986 = vmatprep.subr.mxu0 0.0
    %987 = vmatpush1.msra.mxu0 0.0
    %988 = vmatprep.subr.mxu0 0.0
    %989 = vmatpush1.msra.mxu0 0.0
    %990 = vmatprep.subr.mxu0 0.0
    %991 = vmatpush1.msra.mxu0 0.0
    %992 = vmatprep.subr.mxu0 0.0
    %993 = vmatpush1.msra.mxu0 0.0
    %994 = vmatprep.subr.mxu0 0.0
    %995 = vmatpush1.msra.mxu0 0.0
    %996 = vmatprep.subr.mxu0 0.0
    %997 = vmatpush1.msra.mxu0 0.0
    %998 = vmatprep.subr.mxu0 0.0
    %999 = vmatpush1.msra.mxu0 0.0
    %1000 = vmatprep.subr.mxu0 0.0
    %1001 = vmatpush1.msra.mxu0 0.0
    %1002 = vmatprep.subr.mxu0 0.0
    %1003 = vmatpush1.msra.mxu0 0.0
    %1004 = vmatprep.subr.mxu0 0.0
    %1005 = vmatpush1.msra.mxu0 0.0
    %1006 = vmatprep.subr.mxu0 0.0
    %1007 = vmatpush1.msra.mxu0 0.0
    %1008 = vmatprep.subr.mxu0 0.0
    %1009 = vmatpush1.msra.mxu0 0.0
    %1010 = vmatprep.subr.mxu0 0.0
    %1011 = vmatpush1.msra.mxu0 0.0
    %1012 = vmatprep.subr.mxu0 0.0
    %1013 = vmatpush1.msra.mxu0 0.0
    %1014 = vmatprep.subr.mxu0 0.0
    %1015 = vmatpush1.msra.mxu0 0.0
    %1016 = vmatprep.subr.mxu0 0.0
    %1017 = vmatpush1.msra.mxu0 0.0
    %1018 = vmatprep.subr.mxu0 0.0
    %1019 = vmatpush1.msra.mxu0 0.0
    %1020 = vmatprep.subr.mxu0 0.0
    %1021 = vmatpush1.msra.mxu0 0.0
    %1022 = vmatprep.subr.mxu0 0.0
    %1023 = vmatpush1.msra.mxu0 0.0
    %1024 = vmatprep.subr.mxu0 0.0
    %1025 = vmatpush1.msra.mxu0 0.0
    %1026 = vmatprep.subr.mxu0 0.0
    %1027 = vmatpush1.msra.mxu0 0.0
    %1028 = vmatprep.subr.mxu0 0.0
    %1029 = vmatpush1.msra.mxu0 0.0
    %1030 = vmatprep.mubr.f32.mxu0 0.0
    %1031 = vmatmul.mubr.f32.gmra.mrb[0].mxu0 %v964
    %v1032 = vpop.f32.mrb[0].mxu0
    %v1033 = vadd.f32 0.0, %v1032
    %v1034 = vpop.f32.mrb[0].mxu0
    %1035 = vdwg.mxu0
    %v1037 = vsel %vm889, %v883, 0
    %1039 = vmatprep.subr.mxu0 0.0
    %1040 = vmatpush1.msra.mxu0 %v90
    %1041 = vmatprep.subr.mxu0 0.0
    %1042 = vmatpush1.msra.mxu0 0.0
    %1043 = vmatprep.subr.mxu0 0.0
    %1044 = vmatpush1.msra.mxu0 0.0
    %1045 = vmatprep.subr.mxu0 0.0
    %1046 = vmatpush1.msra.mxu0 0.0
    %1047 = vmatprep.subr.mxu0 0.0
    %1048 = vmatpush1.msra.mxu0 0.0
    %1049 = vmatprep.subr.mxu0 0.0
    %1050 = vmatpush1.msra.mxu0 0.0
    %1051 = vmatprep.subr.mxu0 0.0
    %1052 = vmatpush1.msra.mxu0 0.0
    %1053 = vmatprep.subr.mxu0 0.0
    %1054 = vmatpush1.msra.mxu0 0.0
    %1055 = vmatprep.subr.mxu0 0.0
    %1056 = vmatpush1.msra.mxu0 0.0
    %1057 = vmatprep.subr.mxu0 0.0
    %1058 = vmatpush1.msra.mxu0 0.0
    %1059 = vmatprep.subr.mxu0 0.0
    %1060 = vmatpush1.msra.mxu0 0.0
    %1061 = vmatprep.subr.mxu0 0.0
    %1062 = vmatpush1.msra.mxu0 0.0
    %1063 = vmatprep.subr.mxu0 0.0
    %1064 = vmatpush1.msra.mxu0 0.0
    %1065 = vmatprep.subr.mxu0 0.0
    %1066 = vmatpush1.msra.mxu0 0.0
    %1067 = vmatprep.subr.mxu0 0.0
    %1068 = vmatpush1.msra.mxu0 0.0
    %1069 = vmatprep.subr.mxu0 0.0
    %1070 = vmatpush1.msra.mxu0 0.0
    %1071 = vmatprep.subr.mxu0 0.0
    %1072 = vmatpush1.msra.mxu0 0.0
    %1073 = vmatprep.subr.mxu0 0.0
    %1074 = vmatpush1.msra.mxu0 0.0
    %1075 = vmatprep.subr.mxu0 0.0
    %1076 = vmatpush1.msra.mxu0 0.0
    %1077 = vmatprep.subr.mxu0 0.0
    %1078 = vmatpush1.msra.mxu0 0.0
    %1079 = vmatprep.subr.mxu0 0.0
    %1080 = vmatpush1.msra.mxu0 0.0
    %1081 = vmatprep.subr.mxu0 0.0
    %1082 = vmatpush1.msra.mxu0 0.0
    %1083 = vmatprep.subr.mxu0 0.0
    %1084 = vmatpush1.msra.mxu0 0.0
    %1085 = vmatprep.subr.mxu0 0.0
    %1086 = vmatpush1.msra.mxu0 0.0
    %1087 = vmatprep.subr.mxu0 0.0
    %1088 = vmatpush1.msra.mxu0 0.0
    %1089 = vmatprep.subr.mxu0 0.0
    %1090 = vmatpush1.msra.mxu0 0.0
    %1091 = vmatprep.subr.mxu0 0.0
    %1092 = vmatpush1.msra.mxu0 0.0
    %1093 = vmatprep.subr.mxu0 0.0
    %1094 = vmatpush1.msra.mxu0 0.0
    %1095 = vmatprep.subr.mxu0 0.0
    %1096 = vmatpush1.msra.mxu0 0.0
    %1097 = vmatprep.subr.mxu0 0.0
    %1098 = vmatpush1.msra.mxu0 0.0
    %1099 = vmatprep.subr.mxu0 0.0
    %1100 = vmatpush1.msra.mxu0 0.0
    %1101 = vmatprep.subr.mxu0 0.0
    %1102 = vmatpush1.msra.mxu0 0.0
    %1103 = vmatprep.mubr.f32.mxu0 0.0
    %1104 = vmatmul.mubr.f32.gmra.mrb[0].mxu0 %v1037
    %v1105 = vpop.f32.mrb[0].mxu0
    %v1106 = vadd.f32 0.0, %v1105
    %v1107 = vpop.f32.mrb[0].mxu0
    %1108 = vdwg.mxu0
    %v1110 = vsel %vm889, %v884, 0
    %1112 = vmatprep.subr.mxu0 0.0
    %1113 = vmatpush1.msra.mxu0 %v91
    %1114 = vmatprep.subr.mxu0 0.0
    %1115 = vmatpush1.msra.mxu0 0.0
    %1116 = vmatprep.subr.mxu0 0.0
    %1117 = vmatpush1.msra.mxu0 0.0
    %1118 = vmatprep.subr.mxu0 0.0
    %1119 = vmatpush1.msra.mxu0 0.0
    %1120 = vmatprep.subr.mxu0 0.0
    %1121 = vmatpush1.msra.mxu0 0.0
    %1122 = vmatprep.subr.mxu0 0.0
    %1123 = vmatpush1.msra.mxu0 0.0
    %1124 = vmatprep.subr.mxu0 0.0
    %1125 = vmatpush1.msra.mxu0 0.0
    %1126 = vmatprep.subr.mxu0 0.0
    %1127 = vmatpush1.msra.mxu0 0.0
    %1128 = vmatprep.subr.mxu0 0.0
    %1129 = vmatpush1.msra.mxu0 0.0
    %1130 = vmatprep.subr.mxu0 0.0
    %1131 = vmatpush1.msra.mxu0 0.0
    %1132 = vmatprep.subr.mxu0 0.0
    %1133 = vmatpush1.msra.mxu0 0.0
    %1134 = vmatprep.subr.mxu0 0.0
    %1135 = vmatpush1.msra.mxu0 0.0
    %1136 = vmatprep.subr.mxu0 0.0
    %1137 = vmatpush1.msra.mxu0 0.0
    %1138 = vmatprep.subr.mxu0 0.0
    %1139 = vmatpush1.msra.mxu0 0.0
    %1140 = vmatprep.subr.mxu0 0.0
    %1141 = vmatpush1.msra.mxu0 0.0
    %1142 = vmatprep.subr.mxu0 0.0
    %1143 = vmatpush1.msra.mxu0 0.0
    %1144 = vmatprep.subr.mxu0 0.0
    %1145 = vmatpush1.msra.mxu0 0.0
    %1146 = vmatprep.subr.mxu0 0.0
    %1147 = vmatpush1.msra.mxu0 0.0
    %1148 = vmatprep.subr.mxu0 0.0
    %1149 = vmatpush1.msra.mxu0 0.0
    %1150 = vmatprep.subr.mxu0 0.0
    %1151 = vmatpush1.msra.mxu0 0.0
    %1152 = vmatprep.subr.mxu0 0.0
    %1153 = vmatpush1.msra.mxu0 0.0
    %1154 = vmatprep.subr.mxu0 0.0
    %1155 = vmatpush1.msra.mxu0 0.0
    %1156 = vmatprep.subr.mxu0 0.0
    %1157 = vmatpush1.msra.mxu0 0.0
    %1158 = vmatprep.subr.mxu0 0.0
    %1159 = vmatpush1.msra.mxu0 0.0
    %1160 = vmatprep.subr.mxu0 0.0
    %1161 = vmatpush1.msra.mxu0 0.0
    %1162 = vmatprep.subr.mxu0 0.0
    %1163 = vmatpush1.msra.mxu0 0.0
    %1164 = vmatprep.subr.mxu0 0.0
    %1165 = vmatpush1.msra.mxu0 0.0
    %1166 = vmatprep.subr.mxu0 0.0
    %1167 = vmatpush1.msra.mxu0 0.0
    %1168 = vmatprep.subr.mxu0 0.0
    %1169 = vmatpush1.msra.mxu0 0.0
    %1170 = vmatprep.subr.mxu0 0.0
    %1171 = vmatpush1.msra.mxu0 0.0
    %1172 = vmatprep.subr.mxu0 0.0
    %1173 = vmatpush1.msra.mxu0 0.0
    %1174 = vmatprep.subr.mxu0 0.0
    %1175 = vmatpush1.msra.mxu0 0.0
    %1176 = vmatprep.mubr.f32.mxu0 0.0
    %1177 = vmatmul.mubr.f32.gmra.mrb[0].mxu0 %v1110
    %v1178 = vpop.f32.mrb[0].mxu0
    %v1179 = vadd.f32 0.0, %v1178
    %v1180 = vpop.f32.mrb[0].mxu0
    %1181 = vdwg.mxu0
    %v1183 = vsel %vm889, %v885, 0
    %1185 = vmatprep.subr.mxu0 0.0
    %1186 = vmatpush1.msra.mxu0 %v92
    %1187 = vmatprep.subr.mxu0 0.0
    %1188 = vmatpush1.msra.mxu0 0.0
    %1189 = vmatprep.subr.mxu0 0.0
    %1190 = vmatpush1.msra.mxu0 0.0
    %1191 = vmatprep.subr.mxu0 0.0
    %1192 = vmatpush1.msra.mxu0 0.0
    %1193 = vmatprep.subr.mxu0 0.0
    %1194 = vmatpush1.msra.mxu0 0.0
    %1195 = vmatprep.subr.mxu0 0.0
    %1196 = vmatpush1.msra.mxu0 0.0
    %1197 = vmatprep.subr.mxu0 0.0
    %1198 = vmatpush1.msra.mxu0 0.0
    %1199 = vmatprep.subr.mxu0 0.0
    %1200 = vmatpush1.msra.mxu0 0.0
    %1201 = vmatprep.subr.mxu0 0.0
    %1202 = vmatpush1.msra.mxu0 0.0
    %1203 = vmatprep.subr.mxu0 0.0
    %1204 = vmatpush1.msra.mxu0 0.0
    %1205 = vmatprep.subr.mxu0 0.0
    %1206 = vmatpush1.msra.mxu0 0.0
    %1207 = vmatprep.subr.mxu0 0.0
    %1208 = vmatpush1.msra.mxu0 0.0
    %1209 = vmatprep.subr.mxu0 0.0
    %1210 = vmatpush1.msra.mxu0 0.0
    %1211 = vmatprep.subr.mxu0 0.0
    %1212 = vmatpush1.msra.mxu0 0.0
    %1213 = vmatprep.subr.mxu0 0.0
    %1214 = vmatpush1.msra.mxu0 0.0
    %1215 = vmatprep.subr.mxu0 0.0
    %1216 = vmatpush1.msra.mxu0 0.0
    %1217 = vmatprep.subr.mxu0 0.0
    %1218 = vmatpush1.msra.mxu0 0.0
    %1219 = vmatprep.subr.mxu0 0.0
    %1220 = vmatpush1.msra.mxu0 0.0
    %1221 = vmatprep.subr.mxu0 0.0
    %1222 = vmatpush1.msra.mxu0 0.0
    %1223 = vmatprep.subr.mxu0 0.0
    %1224 = vmatpush1.msra.mxu0 0.0
    %1225 = vmatprep.subr.mxu0 0.0
    %1226 = vmatpush1.msra.mxu0 0.0
    %1227 = vmatprep.subr.mxu0 0.0
    %1228 = vmatpush1.msra.mxu0 0.0
    %1229 = vmatprep.subr.mxu0 0.0
    %1230 = vmatpush1.msra.mxu0 0.0
    %1231 = vmatprep.subr.mxu0 0.0
    %1232 = vmatpush1.msra.mxu0 0.0
    %1233 = vmatprep.subr.mxu0 0.0
    %1234 = vmatpush1.msra.mxu0 0.0
    %1235 = vmatprep.subr.mxu0 0.0
    %1236 = vmatpush1.msra.mxu0 0.0
    %1237 = vmatprep.subr.mxu0 0.0
    %1238 = vmatpush1.msra.mxu0 0.0
    %1239 = vmatprep.subr.mxu0 0.0
    %1240 = vmatpush1.msra.mxu0 0.0
    %1241 = vmatprep.subr.mxu0 0.0
    %1242 = vmatpush1.msra.mxu0 0.0
    %1243 = vmatprep.subr.mxu0 0.0
    %1244 = vmatpush1.msra.mxu0 0.0
    %1245 = vmatprep.subr.mxu0 0.0
    %1246 = vmatpush1.msra.mxu0 0.0
    %1247 = vmatprep.subr.mxu0 0.0
    %1248 = vmatpush1.msra.mxu0 0.0
    %1249 = vmatprep.mubr.f32.mxu0 0.0
    %1250 = vmatmul.mubr.f32.gmra.mrb[0].mxu0 %v1183
    %v1251 = vpop.f32.mrb[0].mxu0
    %v1252 = vadd.f32 0.0, %v1251
    %v1253 = vpop.f32.mrb[0].mxu0
    %1254 = vdwg.mxu0
    %v1256 = vsel %vm889, %v886, 0
    %1258 = vmatprep.subr.mxu0 0.0
    %1259 = vmatpush1.msra.mxu0 %v93
    %1260 = vmatprep.subr.mxu0 0.0
    %1261 = vmatpush1.msra.mxu0 0.0
    %1262 = vmatprep.subr.mxu0 0.0
    %1263 = vmatpush1.msra.mxu0 0.0
    %1264 = vmatprep.subr.mxu0 0.0
    %1265 = vmatpush1.msra.mxu0 0.0
    %1266 = vmatprep.subr.mxu0 0.0
    %1267 = vmatpush1.msra.mxu0 0.0
    %1268 = vmatprep.subr.mxu0 0.0
    %1269 = vmatpush1.msra.mxu0 0.0
    %1270 = vmatprep.subr.mxu0 0.0
    %1271 = vmatpush1.msra.mxu0 0.0
    %1272 = vmatprep.subr.mxu0 0.0
    %1273 = vmatpush1.msra.mxu0 0.0
    %1274 = vmatprep.subr.mxu0 0.0
    %1275 = vmatpush1.msra.mxu0 0.0
    %1276 = vmatprep.subr.mxu0 0.0
    %1277 = vmatpush1.msra.mxu0 0.0
    %1278 = vmatprep.subr.mxu0 0.0
    %1279 = vmatpush1.msra.mxu0 0.0
    %1280 = vmatprep.subr.mxu0 0.0
    %1281 = vmatpush1.msra.mxu0 0.0
    %1282 = vmatprep.subr.mxu0 0.0
    %1283 = vmatpush1.msra.mxu0 0.0
    %1284 = vmatprep.subr.mxu0 0.0
    %1285 = vmatpush1.msra.mxu0 0.0
    %1286 = vmatprep.subr.mxu0 0.0
    %1287 = vmatpush1.msra.mxu0 0.0
    %1288 = vmatprep.subr.mxu0 0.0
    %1289 = vmatpush1.msra.mxu0 0.0
    %1290 = vmatprep.subr.mxu0 0.0
    %1291 = vmatpush1.msra.mxu0 0.0
    %1292 = vmatprep.subr.mxu0 0.0
    %1293 = vmatpush1.msra.mxu0 0.0
    %1294 = vmatprep.subr.mxu0 0.0
    %1295 = vmatpush1.msra.mxu0 0.0
    %1296 = vmatprep.subr.mxu0 0.0
    %1297 = vmatpush1.msra.mxu0 0.0
    %1298 = vmatprep.subr.mxu0 0.0
    %1299 = vmatpush1.msra.mxu0 0.0
    %1300 = vmatprep.subr.mxu0 0.0
    %1301 = vmatpush1.msra.mxu0 0.0
    %1302 = vmatprep.subr.mxu0 0.0
    %1303 = vmatpush1.msra.mxu0 0.0
    %1304 = vmatprep.subr.mxu0 0.0
    %1305 = vmatpush1.msra.mxu0 0.0
    %1306 = vmatprep.subr.mxu0 0.0
    %1307 = vmatpush1.msra.mxu0 0.0
    %1308 = vmatprep.subr.mxu0 0.0
    %1309 = vmatpush1.msra.mxu0 0.0
    %1310 = vmatprep.subr.mxu0 0.0
    %1311 = vmatpush1.msra.mxu0 0.0
    %1312 = vmatprep.subr.mxu0 0.0
    %1313 = vmatpush1.msra.mxu0 0.0
    %1314 = vmatprep.subr.mxu0 0.0
    %1315 = vmatpush1.msra.mxu0 0.0
    %1316 = vmatprep.subr.mxu0 0.0
    %1317 = vmatpush1.msra.mxu0 0.0
    %1318 = vmatprep.subr.mxu0 0.0
    %1319 = vmatpush1.msra.mxu0 0.0
    %1320 = vmatprep.subr.mxu0 0.0
    %1321 = vmatpush1.msra.mxu0 0.0
    %1322 = vmatprep.mubr.f32.mxu0 0.0
    %1323 = vmatmul.mubr.f32.gmra.mrb[0].mxu0 %v1256
    %v1324 = vpop.f32.mrb[0].mxu0
    %v1325 = vadd.f32 0.0, %v1324
    %v1326 = vpop.f32.mrb[0].mxu0
    %1327 = vdwg.mxu0
    %v1329 = vsel %vm889, %v887, 0
    %1331 = vmatprep.subr.mxu0 0.0
    %1332 = vmatpush1.msra.mxu0 %v94
    %1333 = vmatprep.subr.mxu0 0.0
    %1334 = vmatpush1.msra.mxu0 0.0
    %1335 = vmatprep.subr.mxu0 0.0
    %1336 = vmatpush1.msra.mxu0 0.0
    %1337 = vmatprep.subr.mxu0 0.0
    %1338 = vmatpush1.msra.mxu0 0.0
    %1339 = vmatprep.subr.mxu0 0.0
    %1340 = vmatpush1.msra.mxu0 0.0
    %1341 = vmatprep.subr.mxu0 0.0
    %1342 = vmatpush1.msra.mxu0 0.0
    %1343 = vmatprep.subr.mxu0 0.0
    %1344 = vmatpush1.msra.mxu0 0.0
    %1345 = vmatprep.subr.mxu0 0.0
    %1346 = vmatpush1.msra.mxu0 0.0
    %1347 = vmatprep.subr.mxu0 0.0
    %1348 = vmatpush1.msra.mxu0 0.0
    %1349 = vmatprep.subr.mxu0 0.0
    %1350 = vmatpush1.msra.mxu0 0.0
    %1351 = vmatprep.subr.mxu0 0.0
    %1352 = vmatpush1.msra.mxu0 0.0
    %1353 = vmatprep.subr.mxu0 0.0
    %1354 = vmatpush1.msra.mxu0 0.0
    %1355 = vmatprep.subr.mxu0 0.0
    %1356 = vmatpush1.msra.mxu0 0.0
    %1357 = vmatprep.subr.mxu0 0.0
    %1358 = vmatpush1.msra.mxu0 0.0
    %1359 = vmatprep.subr.mxu0 0.0
    %1360 = vmatpush1.msra.mxu0 0.0
    %1361 = vmatprep.subr.mxu0 0.0
    %1362 = vmatpush1.msra.mxu0 0.0
    %1363 = vmatprep.subr.mxu0 0.0
    %1364 = vmatpush1.msra.mxu0 0.0
    %1365 = vmatprep.subr.mxu0 0.0
    %1366 = vmatpush1.msra.mxu0 0.0
    %1367 = vmatprep.subr.mxu0 0.0
    %1368 = vmatpush1.msra.mxu0 0.0
    %1369 = vmatprep.subr.mxu0 0.0
    %1370 = vmatpush1.msra.mxu0 0.0
    %1371 = vmatprep.subr.mxu0 0.0
    %1372 = vmatpush1.msra.mxu0 0.0
    %1373 = vmatprep.subr.mxu0 0.0
    %1374 = vmatpush1.msra.mxu0 0.0
    %1375 = vmatprep.subr.mxu0 0.0
    %1376 = vmatpush1.msra.mxu0 0.0
    %1377 = vmatprep.subr.mxu0 0.0
    %1378 = vmatpush1.msra.mxu0 0.0
    %1379 = vmatprep.subr.mxu0 0.0
    %1380 = vmatpush1.msra.mxu0 0.0
    %1381 = vmatprep.subr.mxu0 0.0
    %1382 = vmatpush1.msra.mxu0 0.0
    %1383 = vmatprep.subr.mxu0 0.0
    %1384 = vmatpush1.msra.mxu0 0.0
    %1385 = vmatprep.subr.mxu0 0.0
    %1386 = vmatpush1.msra.mxu0 0.0
    %1387 = vmatprep.subr.mxu0 0.0
    %1388 = vmatpush1.msra.mxu0 0.0
    %1389 = vmatprep.subr.mxu0 0.0
    %1390 = vmatpush1.msra.mxu0 0.0
    %1391 = vmatprep.subr.mxu0 0.0
    %1392 = vmatpush1.msra.mxu0 0.0
    %1393 = vmatprep.subr.mxu0 0.0
    %1394 = vmatpush1.msra.mxu0 0.0
    %1395 = vmatprep.mubr.f32.mxu0 0.0
    %1396 = vmatmul.mubr.f32.gmra.mrb[0].mxu0 %v1329
    %v1397 = vpop.f32.mrb[0].mxu0
    %v1398 = vadd.f32 0.0, %v1397
    %v1399 = vpop.f32.mrb[0].mxu0
    %1400 = vdwg.mxu0
    %v1402 = vsel %vm889, %v888, 0
    %1404 = vmatprep.subr.mxu0 0.0
    %1405 = vmatpush1.msra.mxu0 %v95
    %1406 = vmatprep.subr.mxu0 0.0
    %1407 = vmatpush1.msra.mxu0 0.0
    %1408 = vmatprep.subr.mxu0 0.0
    %1409 = vmatpush1.msra.mxu0 0.0
    %1410 = vmatprep.subr.mxu0 0.0
    %1411 = vmatpush1.msra.mxu0 0.0
    %1412 = vmatprep.subr.mxu0 0.0
    %1413 = vmatpush1.msra.mxu0 0.0
    %1414 = vmatprep.subr.mxu0 0.0
    %1415 = vmatpush1.msra.mxu0 0.0
    %1416 = vmatprep.subr.mxu0 0.0
    %1417 = vmatpush1.msra.mxu0 0.0
    %1418 = vmatprep.subr.mxu0 0.0
    %1419 = vmatpush1.msra.mxu0 0.0
    %1420 = vmatprep.subr.mxu0 0.0
    %1421 = vmatpush1.msra.mxu0 0.0
    %1422 = vmatprep.subr.mxu0 0.0
    %1423 = vmatpush1.msra.mxu0 0.0
    %1424 = vmatprep.subr.mxu0 0.0
    %1425 = vmatpush1.msra.mxu0 0.0
    %1426 = vmatprep.subr.mxu0 0.0
    %1427 = vmatpush1.msra.mxu0 0.0
    %1428 = vmatprep.subr.mxu0 0.0
    %1429 = vmatpush1.msra.mxu0 0.0
    %1430 = vmatprep.subr.mxu0 0.0
    %1431 = vmatpush1.msra.mxu0 0.0
    %1432 = vmatprep.subr.mxu0 0.0
    %1433 = vmatpush1.msra.mxu0 0.0
    %1434 = vmatprep.subr.mxu0 0.0
    %1435 = vmatpush1.msra.mxu0 0.0
    %1436 = vmatprep.subr.mxu0 0.0
    %1437 = vmatpush1.msra.mxu0 0.0
    %1438 = vmatprep.subr.mxu0 0.0
    %1439 = vmatpush1.msra.mxu0 0.0
    %1440 = vmatprep.subr.mxu0 0.0
    %1441 = vmatpush1.msra.mxu0 0.0
    %1442 = vmatprep.subr.mxu0 0.0
    %1443 = vmatpush1.msra.mxu0 0.0
    %1444 = vmatprep.subr.mxu0 0.0
    %1445 = vmatpush1.msra.mxu0 0.0
    %1446 = vmatprep.subr.mxu0 0.0
    %1447 = vmatpush1.msra.mxu0 0.0
    %1448 = vmatprep.subr.mxu0 0.0
    %1449 = vmatpush1.msra.mxu0 0.0
    %1450 = vmatprep.subr.mxu0 0.0
    %1451 = vmatpush1.msra.mxu0 0.0
    %1452 = vmatprep.subr.mxu0 0.0
    %1453 = vmatpush1.msra.mxu0 0.0
    %1454 = vmatprep.subr.mxu0 0.0
    %1455 = vmatpush1.msra.mxu0 0.0
    %1456 = vmatprep.subr.mxu0 0.0
    %1457 = vmatpush1.msra.mxu0 0.0
    %1458 = vmatprep.subr.mxu0 0.0
    %1459 = vmatpush1.msra.mxu0 0.0
    %1460 = vmatprep.subr.mxu0 0.0
    %1461 = vmatpush1.msra.mxu0 0.0
    %1462 = vmatprep.subr.mxu0 0.0
    %1463 = vmatpush1.msra.mxu0 0.0
    %1464 = vmatprep.subr.mxu0 0.0
    %1465 = vmatpush1.msra.mxu0 0.0
    %1466 = vmatprep.subr.mxu0 0.0
    %1467 = vmatpush1.msra.mxu0 0.0
    %1468 = vmatprep.mubr.f32.mxu0 0.0
    %1469 = vmatmul.mubr.f32.gmra.mrb[0].mxu0 %v1402
    %v1470 = vpop.f32.mrb[0].mxu0
    %v1471 = vadd.f32 0.0, %v1470
    %v1472 = vpop.f32.mrb[0].mxu0
    %1473 = vdwg.mxu0
    %v1474 = vld [vmem:[#allocation8] sm:$0xff]
    %v1475 = vld [vmem:[#allocation8 + $0x8] sm:$0xff]
    %v1476 = vld [vmem:[#allocation8 + $0x10] sm:$0xff]
    %v1477 = vld [vmem:[#allocation8 + $0x18] sm:$0xff]
    %v1478 = vld [vmem:[#allocation8 + $0x20] sm:$0xff]
    %v1479 = vld [vmem:[#allocation8 + $0x28] sm:$0xff]
    %v1480 = vld [vmem:[#allocation8 + $0x30] sm:$0xff]
    %v1481 = vld [vmem:[#allocation8 + $0x38] sm:$0xff]
    %v1482 = vld [vmem:[#allocation8 + $0x40] sm:$0xff]
    %v1483 = vld [vmem:[#allocation8 + $0x48] sm:$0xff]
    %v1484 = vld [vmem:[#allocation8 + $0x50] sm:$0xff]
    %v1485 = vld [vmem:[#allocation8 + $0x58] sm:$0xff]
    %v1486 = vld [vmem:[#allocation8 + $0x60] sm:$0xff]
    %v1487 = vld [vmem:[#allocation8 + $0x68] sm:$0xff]
    %v1488 = vld [vmem:[#allocation8 + $0x70] sm:$0xff]
    %v1489 = vld [vmem:[#allocation8 + $0x78] sm:$0xff]
    %v1490 = vld [vmem:[#allocation10] sm:$0xff]
    %v1491 = vld [vmem:[#allocation10 + $0x8] sm:$0xff]
    %v1492 = vld [vmem:[#allocation10 + $0x10] sm:$0xff]
    %v1493 = vld [vmem:[#allocation10 + $0x18] sm:$0xff]
    %v1494 = vld [vmem:[#allocation10 + $0x20] sm:$0xff]
    %v1495 = vld [vmem:[#allocation10 + $0x28] sm:$0xff]
    %v1496 = vld [vmem:[#allocation10 + $0x30] sm:$0xff]
    %v1497 = vld [vmem:[#allocation10 + $0x38] sm:$0xff]
    %v1498 = vld [vmem:[#allocation10 + $0x40] sm:$0xff]
    %v1499 = vld [vmem:[#allocation10 + $0x48] sm:$0xff]
    %v1500 = vld [vmem:[#allocation10 + $0x50] sm:$0xff]
    %v1501 = vld [vmem:[#allocation10 + $0x58] sm:$0xff]
    %v1502 = vld [vmem:[#allocation10 + $0x60] sm:$0xff]
    %v1503 = vld [vmem:[#allocation10 + $0x68] sm:$0xff]
    %v1504 = vld [vmem:[#allocation10 + $0x70] sm:$0xff]
    %v1505 = vld [vmem:[#allocation10 + $0x78] sm:$0xff]
    %1506 = vmatprep.subr.mxu0 0.0
    %1507 = vmatpush1.msra.mxu0 %v1490
    %1508 = vmatprep.subr.mxu0 0.0
    %1509 = vmatpush1.msra.mxu0 %v1491
    %1510 = vmatprep.subr.mxu0 0.0
    %1511 = vmatpush1.msra.mxu0 %v1492
    %1512 = vmatprep.subr.mxu0 0.0
    %1513 = vmatpush1.msra.mxu0 %v1493
    %1514 = vmatprep.subr.mxu0 0.0
    %1515 = vmatpush1.msra.mxu0 %v1494
    %1516 = vmatprep.subr.mxu0 0.0
    %1517 = vmatpush1.msra.mxu0 %v1495
    %1518 = vmatprep.subr.mxu0 0.0
    %1519 = vmatpush1.msra.mxu0 %v1496
    %1520 = vmatprep.subr.mxu0 0.0
    %1521 = vmatpush1.msra.mxu0 %v1497
    %1522 = vmatprep.subr.mxu0 0.0
    %1523 = vmatpush1.msra.mxu0 %v1498
    %1524 = vmatprep.subr.mxu0 0.0
    %1525 = vmatpush1.msra.mxu0 %v1499
    %1526 = vmatprep.subr.mxu0 0.0
    %1527 = vmatpush1.msra.mxu0 %v1500
    %1528 = vmatprep.subr.mxu0 0.0
    %1529 = vmatpush1.msra.mxu0 %v1501
    %1530 = vmatprep.subr.mxu0 0.0
    %1531 = vmatpush1.msra.mxu0 %v1502
    %1532 = vmatprep.subr.mxu0 0.0
    %1533 = vmatpush1.msra.mxu0 %v1503
    %1534 = vmatprep.subr.mxu0 0.0
    %1535 = vmatpush1.msra.mxu0 %v1504
    %1536 = vmatprep.subr.mxu0 0.0
    %1537 = vmatpush1.msra.mxu0 %v1505
    %1538 = vmatprep.subr.mxu0 0.0
    %1539 = vmatpush1.msra.mxu0 0.0
    %1540 = vmatprep.subr.mxu0 0.0
    %1541 = vmatpush1.msra.mxu0 0.0
    %1542 = vmatprep.subr.mxu0 0.0
    %1543 = vmatpush1.msra.mxu0 0.0
    %1544 = vmatprep.subr.mxu0 0.0
    %1545 = vmatpush1.msra.mxu0 0.0
    %1546 = vmatprep.subr.mxu0 0.0
    %1547 = vmatpush1.msra.mxu0 0.0
    %1548 = vmatprep.subr.mxu0 0.0
    %1549 = vmatpush1.msra.mxu0 0.0
    %1550 = vmatprep.subr.mxu0 0.0
    %1551 = vmatpush1.msra.mxu0 0.0
    %1552 = vmatprep.subr.mxu0 0.0
    %1553 = vmatpush1.msra.mxu0 0.0
    %1554 = vmatprep.subr.mxu0 0.0
    %1555 = vmatpush1.msra.mxu0 0.0
    %1556 = vmatprep.subr.mxu0 0.0
    %1557 = vmatpush1.msra.mxu0 0.0
    %1558 = vmatprep.subr.mxu0 0.0
    %1559 = vmatpush1.msra.mxu0 0.0
    %1560 = vmatprep.subr.mxu0 0.0
    %1561 = vmatpush1.msra.mxu0 0.0
    %1562 = vmatprep.subr.mxu0 0.0
    %1563 = vmatpush1.msra.mxu0 0.0
    %1564 = vmatprep.subr.mxu0 0.0
    %1565 = vmatpush1.msra.mxu0 0.0
    %1566 = vmatprep.subr.mxu0 0.0
    %1567 = vmatpush1.msra.mxu0 0.0
    %1568 = vmatprep.subr.mxu0 0.0
    %1569 = vmatpush1.msra.mxu0 0.0
    %1570 = vmatprep.mubr.f32.mxu0 0.0
    %1571 = vmatmul.mubr.f32.gmra.mrb[0].mxu0 %v87
    %v1572 = vpop.f32.mrb[0].mxu0
    %v1573 = vadd.f32 0.0, %v1572
    %v1574 = vpop.f32.mrb[0].mxu0
    %1575 = vdwg.mxu0
    %v1584 = vrot.slane %v1033, 7
    %vm1585 = vcmask 1041409
    %v1586 = vsel %vm1585, %v1584, %v960
    %v1587 = vrot.slane %v1106, 6
    %vm1588 = vcmask 1042434
    %v1589 = vsel %vm1588, %v1587, %v1586
    %v1590 = vrot.slane %v1179, 5
    %vm1591 = vcmask 1043459
    %v1592 = vsel %vm1591, %v1590, %v1589
    %v1593 = vrot.slane %v1252, 4
    %vm1594 = vcmask 1044484
    %v1595 = vsel %vm1594, %v1593, %v1592
    %v1596 = vrot.slane %v1325, 3
    %vm1597 = vcmask 1045509
    %v1598 = vsel %vm1597, %v1596, %v1595
    %v1599 = vrot.slane %v1398, 2
    %vm1600 = vcmask 1046534
    %v1601 = vsel %vm1600, %v1599, %v1598
    %v1602 = vrot.slane %v1471, 1
    %vm1603 = vcmask 1047559
    %v1604 = vsel %vm1603, %v1602, %v1601
    %1606 = vmatprep.subr.mxu0 0.0
    %1607 = vmatpush1.msra.mxu0 %v1474
    %1608 = vmatprep.subr.mxu0 0.0
    %1609 = vmatpush1.msra.mxu0 %v1475
    %1610 = vmatprep.subr.mxu0 0.0
    %1611 = vmatpush1.msra.mxu0 %v1476
    %1612 = vmatprep.subr.mxu0 0.0
    %1613 = vmatpush1.msra.mxu0 %v1477
    %1614 = vmatprep.subr.mxu0 0.0
    %1615 = vmatpush1.msra.mxu0 %v1478
    %1616 = vmatprep.subr.mxu0 0.0
    %1617 = vmatpush1.msra.mxu0 %v1479
    %1618 = vmatprep.subr.mxu0 0.0
    %1619 = vmatpush1.msra.mxu0 %v1480
    %1620 = vmatprep.subr.mxu0 0.0
    %1621 = vmatpush1.msra.mxu0 %v1481
    %1622 = vmatprep.subr.mxu0 0.0
    %1623 = vmatpush1.msra.mxu0 %v1482
    %1624 = vmatprep.subr.mxu0 0.0
    %1625 = vmatpush1.msra.mxu0 %v1483
    %1626 = vmatprep.subr.mxu0 0.0
    %1627 = vmatpush1.msra.mxu0 %v1484
    %1628 = vmatprep.subr.mxu0 0.0
    %1629 = vmatpush1.msra.mxu0 %v1485
    %1630 = vmatprep.subr.mxu0 0.0
    %1631 = vmatpush1.msra.mxu0 %v1486
    %1632 = vmatprep.subr.mxu0 0.0
    %1633 = vmatpush1.msra.mxu0 %v1487
    %1634 = vmatprep.subr.mxu0 0.0
    %1635 = vmatpush1.msra.mxu0 %v1488
    %1636 = vmatprep.subr.mxu0 0.0
    %1637 = vmatpush1.msra.mxu0 %v1489
    %1638 = vmatprep.subr.mxu0 0.0
    %1639 = vmatpush1.msra.mxu0 0.0
    %1640 = vmatprep.subr.mxu0 0.0
    %1641 = vmatpush1.msra.mxu0 0.0
    %1642 = vmatprep.subr.mxu0 0.0
    %1643 = vmatpush1.msra.mxu0 0.0
    %1644 = vmatprep.subr.mxu0 0.0
    %1645 = vmatpush1.msra.mxu0 0.0
    %1646 = vmatprep.subr.mxu0 0.0
    %1647 = vmatpush1.msra.mxu0 0.0
    %1648 = vmatprep.subr.mxu0 0.0
    %1649 = vmatpush1.msra.mxu0 0.0
    %1650 = vmatprep.subr.mxu0 0.0
    %1651 = vmatpush1.msra.mxu0 0.0
    %1652 = vmatprep.subr.mxu0 0.0
    %1653 = vmatpush1.msra.mxu0 0.0
    %1654 = vmatprep.subr.mxu0 0.0
    %1655 = vmatpush1.msra.mxu0 0.0
    %1656 = vmatprep.subr.mxu0 0.0
    %1657 = vmatpush1.msra.mxu0 0.0
    %1658 = vmatprep.subr.mxu0 0.0
    %1659 = vmatpush1.msra.mxu0 0.0
    %1660 = vmatprep.subr.mxu0 0.0
    %1661 = vmatpush1.msra.mxu0 0.0
    %1662 = vmatprep.subr.mxu0 0.0
    %1663 = vmatpush1.msra.mxu0 0.0
    %1664 = vmatprep.subr.mxu0 0.0
    %1665 = vmatpush1.msra.mxu0 0.0
    %1666 = vmatprep.subr.mxu0 0.0
    %1667 = vmatpush1.msra.mxu0 0.0
    %1668 = vmatprep.subr.mxu0 0.0
    %1669 = vmatpush1.msra.mxu0 0.0
    %1670 = vmatprep.mubr.f32.mxu0 0.0
    %1671 = vmatmul.mubr.f32.gmra.mrb[0].mxu0 %v1604
    %v1672 = vpop.f32.mrb[0].mxu0
    %v1673 = vadd.f32 %v1573, %v1672
    %v1674 = vpop.f32.mrb[0].mxu0
    %1675 = vdwg.mxu0
    %v1676 = vtanh.pop %v1673
    %1677 = vst [vmem:[#allocation11] sm:$0xff] %v1676
    // Predicated region
    $region42: #{tpu_custom_call.1} parent=1 // pred_check
      _
    $region43: #{tpu_custom_call.1} parent=1 // pred_check_branch
      %1679 = sbr.rel (0) target = $region45
    $region44: #{tpu_custom_call.1} parent=1 // pred_region
      %s1681 = ssub.s32 128, 128
      %1682 = vsyncadd [#allocation4], %s1681
      %s1684 = sshll.u32 [#allocation11], 4
      %s1685 = int_to_ptr.vmem [resolvable:$true] %s1684
      %1687 = dma.vmem_to_hbm [thread:$0]  %s1685, 128, %s5, [#allocation4]
    $region45: #{tpu_custom_call.1} parent=1 // pred_fallthru
      _
    // Predicated region
    $region46: #{tpu_custom_call.1} parent=1 // pred_check
      _
    $region47: #{tpu_custom_call.1} parent=1 // pred_check_branch
      %1689 = sbr.rel (0) target = $region49
    $region48: #{tpu_custom_call.1} parent=1 // pred_region
      %1690 = dma.done [#allocation4], 128
    $region49: #{tpu_custom_call.1} parent=1 // pred_fallthru
      _
    %1691 = vsyncpa [#allocation3], 1
    %1692 = vsyncpa [#allocation6], 1
    %1693 = vsyncpa [#allocation9], 1
    %1694 = vsyncpa [#allocation4], 1

</llo_original>
